<compile_context>
chip_gen: v6e
topology: v6e:2x2x1
jax: 0.10.0
libtpu: 0.0.40
codegen_flags: <defaults>
</compile_context>

<pallas_src>
import functools

import jax
import jax.numpy as jnp
from jax.experimental import pallas as pl
from jax.experimental.pallas import tpu as pltpu


def _deeplog_kernel(x_ref, wih_ref, whh_ref, b_ref, wout_ref, bout_ref,
                    out_ref, seq_ref, *, T, B, H, L):
    """DeepLog forward.

    x_ref    : (T*B, H)    time-major input, feature dim zero-padded to H
    wih_ref  : (L, H, 4H)  input->gate weights  (pre-transposed; g-gate cols pre-scaled x2)
    whh_ref  : (L, H, 4H)  hidden->gate weights (pre-transposed; g-gate cols pre-scaled x2)
    b_ref    : (L, 1, 4H)  combined bias b_ih + b_hh (g-gate entries pre-scaled x2)
    wout_ref : (H, O)      output Linear weight (pre-transposed)
    bout_ref : (1, O)      output Linear bias
    out_ref  : (B, O)      softmax probabilities
    seq_ref  : (T*B, H)    VMEM scratch: packed per-layer outputs fed to the next layer
    """
    h = jnp.zeros((B, H), jnp.float32)
    for l in range(L):
        # ---- hoisted input projection: one matmul for all T time steps ----
        src = x_ref[...] if l == 0 else seq_ref[...]            # (T*B, H)
        gates_in = (jnp.dot(src, wih_ref[l], preferred_element_type=jnp.float32)
                    + b_ref[l])                                  # (T*B, 4H)
        whh = whh_ref[l]                                         # (H, 4H)
        h = jnp.zeros((B, H), jnp.float32)
        c = jnp.zeros((B, H), jnp.float32)
        for t in range(T):
            z = gates_in[t * B:(t + 1) * B, :] + jnp.dot(
                h, whh, preferred_element_type=jnp.float32)      # (B, 4H)
            # sigmoid(x) = 0.5*tanh(0.5*x) + 0.5 ; g-gate columns were pre-scaled by 2
            # so tanh(0.5 * z_g') == tanh(z_g).  One EUP tanh covers all four gates.
            tt = jnp.tanh(0.5 * z)
            i = 0.5 * tt[:, 0:H] + 0.5
            f = 0.5 * tt[:, H:2 * H] + 0.5
            g = tt[:, 2 * H:3 * H]
            o = 0.5 * tt[:, 3 * H:4 * H] + 0.5
            c = f * c + i * g
            h = o * jnp.tanh(c)
            if l < L - 1:
                seq_ref[t * B:(t + 1) * B, :] = h                # packed buffer, no lists

    # h is out[:, -1, :] of the top LSTM layer.
    # TODO(synk): nn.Dropout is absent in DeepLog; nothing omitted here.
    logits = (jnp.dot(h, wout_ref[...], preferred_element_type=jnp.float32)
              + bout_ref[...])                                   # (B, O)
    m = jnp.max(logits, axis=1, keepdims=True)
    e = jnp.exp(logits - m)
    out_ref[...] = e / jnp.sum(e, axis=1, keepdims=True)


def prepare_params(w_ih, w_hh, b_ih, b_hh, w_out, b_out, hidden_size):
    """One-time repack of PyTorch-layout LSTM/Linear params into kernel layout.

    Call once at parameter-load time (NOT per inference call).
    """
    L = len(w_ih)
    H = hidden_size
    # gate order is PyTorch's (i, f, g, o); scale the g block by 2 for the tanh trick
    gate_scale = jnp.concatenate([
        jnp.ones((2 * H,), jnp.float32),
        2.0 * jnp.ones((H,), jnp.float32),
        jnp.ones((H,), jnp.float32),
    ])
    wih_k, whh_k, b_k = [], [], []
    for l in range(L):
        wt = jnp.asarray(w_ih[l], jnp.float32).T                 # (in_l, 4H)
        assert wt.shape[0] <= H, "input_size > hidden_size not supported by this kernel"
        if wt.shape[0] < H:                                      # zero-pad layer-0 input dim
            wt = jnp.pad(wt, ((0, H - wt.shape[0]), (0, 0)))
        wih_k.append(wt * gate_scale[None, :])
        whh_k.append(jnp.asarray(w_hh[l], jnp.float32).T * gate_scale[None, :])
        b_k.append(((jnp.asarray(b_ih[l], jnp.float32)
                     + jnp.asarray(b_hh[l], jnp.float32)) * gate_scale).reshape(1, 4 * H))
    return (jnp.stack(wih_k),                                    # (L, H, 4H)
            jnp.stack(whh_k),                                    # (L, H, 4H)
            jnp.stack(b_k),                                      # (L, 1, 4H)
            jnp.asarray(w_out, jnp.float32).T,                   # (H, O)
            jnp.asarray(b_out, jnp.float32).reshape(1, -1))      # (1, O)


@jax.jit
def deeplog_forward(x, prepared):
    """x: (T, B, input_size) float32 -> softmax probabilities (B, output_size)."""
    wih, whh, bias, wout, bout = prepared
    T, B, cin = x.shape
    L, H, _ = wih.shape
    O = wout.shape[1]
    x2 = x.reshape(T * B, cin).astype(jnp.float32)               # time-major packing
    if cin < H:
        x2 = jnp.pad(x2, ((0, 0), (0, H - cin)))                 # matches zero-padded W_ih rows

    vmem = pl.BlockSpec(memory_space=pltpu.MemorySpace.VMEM)
    kernel = functools.partial(_deeplog_kernel, T=T, B=B, H=H, L=L)
    return pl.pallas_call(
        kernel,
        out_shape=jax.ShapeDtypeStruct((B, O), jnp.float32),
        in_specs=[vmem] * 6,
        out_specs=vmem,
        scratch_shapes=[pltpu.VMEM((T * B, H), jnp.float32)],
    )(x2, wih, whh, bias, wout, bout)


# ---------------- pure-JAX reference (for verification) ----------------
def deeplog_reference(x, w_ih, w_hh, b_ih, b_hh, w_out, b_out):
    T, B, _ = x.shape
    L = len(w_ih)
    H = w_hh[0].shape[1]
    hi = jax.lax.Precision.HIGHEST
    seq = [x[t] for t in range(T)]
    for l in range(L):
        h = jnp.zeros((B, H), jnp.float32)
        c = jnp.zeros((B, H), jnp.float32)
        outs = []
        for t in range(T):
            z = (jnp.dot(seq[t], w_ih[l].T, precision=hi)
                 + jnp.dot(h, w_hh[l].T, precision=hi) + b_ih[l] + b_hh[l])
            i = jax.nn.sigmoid(z[:, 0:H])
            f = jax.nn.sigmoid(z[:, H:2 * H])
            g = jnp.tanh(z[:, 2 * H:3 * H])
            o = jax.nn.sigmoid(z[:, 3 * H:4 * H])
            c = f * c + i * g
            h = o * jnp.tanh(c)
            outs.append(h)
        seq = outs
    logits = jnp.dot(seq[-1], w_out.T, precision=hi) + b_out     # out[:, -1, :] of top layer
    return jax.nn.softmax(logits, axis=1)


if __name__ == "__main__":
    INPUT, HIDDEN, OUTPUT, LAYERS = 28, 64, 28, 2
    T, B = 8, 2

    key = jax.random.PRNGKey(0)
    ks = jax.random.split(key, 4 * LAYERS + 3)
    s = 0.1
    w_ih, w_hh, b_ih, b_hh = [], [], [], []
    k = 0
    for l in range(LAYERS):
        in_l = INPUT if l == 0 else HIDDEN
        w_ih.append(jax.random.normal(ks[k], (4 * HIDDEN, in_l), jnp.float32) * s); k += 1
        w_hh.append(jax.random.normal(ks[k], (4 * HIDDEN, HIDDEN), jnp.float32) * s); k += 1
        b_ih.append(jax.random.normal(ks[k], (4 * HIDDEN,), jnp.float32) * s); k += 1
        b_hh.append(jax.random.normal(ks[k], (4 * HIDDEN,), jnp.float32) * s); k += 1
    w_out = jax.random.normal(ks[k], (OUTPUT, HIDDEN), jnp.float32) * s; k += 1
    b_out = jax.random.normal(ks[k], (OUTPUT,), jnp.float32) * s; k += 1
    x = jax.random.uniform(ks[k], (T, B, INPUT), jnp.float32)

    prepared = prepare_params(w_ih, w_hh, b_ih, b_hh, w_out, b_out, HIDDEN)

    out = jax.block_until_ready(deeplog_forward(x, prepared))
    ref = jax.block_until_ready(deeplog_reference(x, w_ih, w_hh, b_ih, b_hh, w_out, b_out))

    assert out.shape == (B, OUTPUT)
    assert bool(jnp.all(jnp.isfinite(out)))
    assert jnp.allclose(jnp.sum(out, axis=1), 1.0, atol=1e-4)
    assert jnp.allclose(out, ref, atol=2e-3, rtol=2e-3)
    print("KERNEL_OK")
</pallas_src>

<mosaic_0001>
module attributes {stable_mosaic.version = 11 : i64} {
  func.func @_deeplog_kernel(%arg0: memref<16x64xf32, #tpu.memory_space<vmem>>, %arg1: memref<2x64x256xf32, #tpu.memory_space<vmem>>, %arg2: memref<2x64x256xf32, #tpu.memory_space<vmem>>, %arg3: memref<2x1x256xf32, #tpu.memory_space<vmem>>, %arg4: memref<64x28xf32, #tpu.memory_space<vmem>>, %arg5: memref<1x28xf32, #tpu.memory_space<vmem>>, %arg6: memref<2x28xf32, #tpu.memory_space<vmem>>, %arg7: memref<16x64xf32, #tpu.memory_space<vmem>>) attributes {dimension_semantics = [], scalar_prefetch = 0 : i64, scratch_operands = 1 : i64, tpu.core_type = #tpu.core_type<tc>} {
    %c0 = arith.constant 0 : index
    %c0_0 = arith.constant 0 : index
    %0 = vector.load %arg0[%c0, %c0_0] : memref<16x64xf32, #tpu.memory_space<vmem>>, vector<16x64xf32>
    %c0_1 = arith.constant 0 : index
    %c0_2 = arith.constant 0 : index
    %c0_3 = arith.constant 0 : index
    %1 = vector.load %arg1[%c0_1, %c0_2, %c0_3] : memref<2x64x256xf32, #tpu.memory_space<vmem>>, vector<1x64x256xf32>
    %2 = vector.shape_cast %1 : vector<1x64x256xf32> to vector<64x256xf32>
    %cst = arith.constant dense<0.000000e+00> : vector<16x256xf32>
    %3 = tpu.matmul %0, %2, %cst {dimension_numbers = #tpu.dot_dimension_numbers<[1], [0], [0], [1], [0, 0, 1, 1], [], []>} : vector<16x64xf32>, vector<64x256xf32>, vector<16x256xf32> -> vector<16x256xf32>
    %c0_4 = arith.constant 0 : index
    %c0_5 = arith.constant 0 : index
    %c0_6 = arith.constant 0 : index
    %4 = vector.load %arg3[%c0_4, %c0_5, %c0_6] : memref<2x1x256xf32, #tpu.memory_space<vmem>>, vector<1x1x256xf32>
    %5 = vector.shape_cast %4 : vector<1x1x256xf32> to vector<1x256xf32>
    %6 = vector.broadcast %5 : vector<1x256xf32> to vector<16x256xf32>
    %7 = arith.addf %3, %6 : vector<16x256xf32>
    %c0_7 = arith.constant 0 : index
    %c0_8 = arith.constant 0 : index
    %c0_9 = arith.constant 0 : index
    %8 = vector.load %arg2[%c0_7, %c0_8, %c0_9] : memref<2x64x256xf32, #tpu.memory_space<vmem>>, vector<1x64x256xf32>
    %9 = vector.shape_cast %8 : vector<1x64x256xf32> to vector<64x256xf32>
    %cst_10 = arith.constant 0.000000e+00 : f32
    %10 = vector.broadcast %cst_10 : f32 to vector<2x64xf32>
    %cst_11 = arith.constant 0.000000e+00 : f32
    %11 = vector.broadcast %cst_11 : f32 to vector<2x64xf32>
    %12 = vector.extract_strided_slice %7 {offsets = [0, 0], sizes = [2, 256], strides = [1, 1]} : vector<16x256xf32> to vector<2x256xf32>
    %cst_12 = arith.constant dense<0.000000e+00> : vector<2x256xf32>
    %13 = tpu.matmul %10, %9, %cst_12 {dimension_numbers = #tpu.dot_dimension_numbers<[1], [0], [0], [1], [0, 0, 1, 1], [], []>} : vector<2x64xf32>, vector<64x256xf32>, vector<2x256xf32> -> vector<2x256xf32>
    %14 = arith.addf %12, %13 : vector<2x256xf32>
    %cst_13 = arith.constant 5.000000e-01 : f32
    %15 = vector.broadcast %cst_13 : f32 to vector<2x256xf32>
    %16 = arith.mulf %15, %14 : vector<2x256xf32>
    %17 = math.tanh %16 : vector<2x256xf32>
    %18 = vector.extract_strided_slice %17 {offsets = [0, 0], sizes = [2, 64], strides = [1, 1]} : vector<2x256xf32> to vector<2x64xf32>
    %cst_14 = arith.constant 5.000000e-01 : f32
    %19 = vector.broadcast %cst_14 : f32 to vector<2x64xf32>
    %20 = arith.mulf %19, %18 : vector<2x64xf32>
    %cst_15 = arith.constant 5.000000e-01 : f32
    %21 = vector.broadcast %cst_15 : f32 to vector<2x64xf32>
    %22 = arith.addf %20, %21 : vector<2x64xf32>
    %23 = vector.extract_strided_slice %17 {offsets = [0, 64], sizes = [2, 64], strides = [1, 1]} : vector<2x256xf32> to vector<2x64xf32>
    %cst_16 = arith.constant 5.000000e-01 : f32
    %24 = vector.broadcast %cst_16 : f32 to vector<2x64xf32>
    %25 = arith.mulf %24, %23 : vector<2x64xf32>
    %cst_17 = arith.constant 5.000000e-01 : f32
    %26 = vector.broadcast %cst_17 : f32 to vector<2x64xf32>
    %27 = arith.addf %25, %26 : vector<2x64xf32>
    %28 = vector.extract_strided_slice %17 {offsets = [0, 128], sizes = [2, 64], strides = [1, 1]} : vector<2x256xf32> to vector<2x64xf32>
    %29 = vector.extract_strided_slice %17 {offsets = [0, 192], sizes = [2, 64], strides = [1, 1]} : vector<2x256xf32> to vector<2x64xf32>
    %cst_18 = arith.constant 5.000000e-01 : f32
    %30 = vector.broadcast %cst_18 : f32 to vector<2x64xf32>
    %31 = arith.mulf %30, %29 : vector<2x64xf32>
    %cst_19 = arith.constant 5.000000e-01 : f32
    %32 = vector.broadcast %cst_19 : f32 to vector<2x64xf32>
    %33 = arith.addf %31, %32 : vector<2x64xf32>
    %34 = arith.mulf %27, %11 : vector<2x64xf32>
    %35 = arith.mulf %22, %28 : vector<2x64xf32>
    %36 = arith.addf %34, %35 : vector<2x64xf32>
    %37 = math.tanh %36 : vector<2x64xf32>
    %38 = arith.mulf %33, %37 : vector<2x64xf32>
    %c0_20 = arith.constant 0 : index
    %c0_21 = arith.constant 0 : index
    %39 = vector.load %arg7[%c0_20, %c0_21] : memref<16x64xf32, #tpu.memory_space<vmem>>, vector<2x64xf32>
    tpu.vector_store %arg7[%c0_20, %c0_21], %38 {strides = array<i32>} : memref<16x64xf32, #tpu.memory_space<vmem>>, vector<2x64xf32>,
    %40 = vector.extract_strided_slice %7 {offsets = [2, 0], sizes = [2, 256], strides = [1, 1]} : vector<16x256xf32> to vector<2x256xf32>
    %cst_22 = arith.constant dense<0.000000e+00> : vector<2x256xf32>
    %41 = tpu.matmul %38, %9, %cst_22 {dimension_numbers = #tpu.dot_dimension_numbers<[1], [0], [0], [1], [0, 0, 1, 1], [], []>} : vector<2x64xf32>, vector<64x256xf32>, vector<2x256xf32> -> vector<2x256xf32>
    %42 = arith.addf %40, %41 : vector<2x256xf32>
    %cst_23 = arith.constant 5.000000e-01 : f32
    %43 = vector.broadcast %cst_23 : f32 to vector<2x256xf32>
    %44 = arith.mulf %43, %42 : vector<2x256xf32>
    %45 = math.tanh %44 : vector<2x256xf32>
    %46 = vector.extract_strided_slice %45 {offsets = [0, 0], sizes = [2, 64], strides = [1, 1]} : vector<2x256xf32> to vector<2x64xf32>
    %cst_24 = arith.constant 5.000000e-01 : f32
    %47 = vector.broadcast %cst_24 : f32 to vector<2x64xf32>
    %48 = arith.mulf %47, %46 : vector<2x64xf32>
    %cst_25 = arith.constant 5.000000e-01 : f32
    %49 = vector.broadcast %cst_25 : f32 to vector<2x64xf32>
    %50 = arith.addf %48, %49 : vector<2x64xf32>
    %51 = vector.extract_strided_slice %45 {offsets = [0, 64], sizes = [2, 64], strides = [1, 1]} : vector<2x256xf32> to vector<2x64xf32>
    %cst_26 = arith.constant 5.000000e-01 : f32
    %52 = vector.broadcast %cst_26 : f32 to vector<2x64xf32>
    %53 = arith.mulf %52, %51 : vector<2x64xf32>
    %cst_27 = arith.constant 5.000000e-01 : f32
    %54 = vector.broadcast %cst_27 : f32 to vector<2x64xf32>
    %55 = arith.addf %53, %54 : vector<2x64xf32>
    %56 = vector.extract_strided_slice %45 {offsets = [0, 128], sizes = [2, 64], strides = [1, 1]} : vector<2x256xf32> to vector<2x64xf32>
    %57 = vector.extract_strided_slice %45 {offsets = [0, 192], sizes = [2, 64], strides = [1, 1]} : vector<2x256xf32> to vector<2x64xf32>
    %cst_28 = arith.constant 5.000000e-01 : f32
    %58 = vector.broadcast %cst_28 : f32 to vector<2x64xf32>
    %59 = arith.mulf %58, %57 : vector<2x64xf32>
    %cst_29 = arith.constant 5.000000e-01 : f32
    %60 = vector.broadcast %cst_29 : f32 to vector<2x64xf32>
    %61 = arith.addf %59, %60 : vector<2x64xf32>
    %62 = arith.mulf %55, %36 : vector<2x64xf32>
    %63 = arith.mulf %50, %56 : vector<2x64xf32>
    %64 = arith.addf %62, %63 : vector<2x64xf32>
    %65 = math.tanh %64 : vector<2x64xf32>
    %66 = arith.mulf %61, %65 : vector<2x64xf32>
    %c2 = arith.constant 2 : index
    %c0_30 = arith.constant 0 : index
    %67 = vector.load %arg7[%c2, %c0_30] : memref<16x64xf32, #tpu.memory_space<vmem>>, vector<2x64xf32>
    tpu.vector_store %arg7[%c2, %c0_30], %66 {strides = array<i32>} : memref<16x64xf32, #tpu.memory_space<vmem>>, vector<2x64xf32>,
    %68 = vector.extract_strided_slice %7 {offsets = [4, 0], sizes = [2, 256], strides = [1, 1]} : vector<16x256xf32> to vector<2x256xf32>
    %cst_31 = arith.constant dense<0.000000e+00> : vector<2x256xf32>
    %69 = tpu.matmul %66, %9, %cst_31 {dimension_numbers = #tpu.dot_dimension_numbers<[1], [0], [0], [1], [0, 0, 1, 1], [], []>} : vector<2x64xf32>, vector<64x256xf32>, vector<2x256xf32> -> vector<2x256xf32>
    %70 = arith.addf %68, %69 : vector<2x256xf32>
    %cst_32 = arith.constant 5.000000e-01 : f32
    %71 = vector.broadcast %cst_32 : f32 to vector<2x256xf32>
    %72 = arith.mulf %71, %70 : vector<2x256xf32>
    %73 = math.tanh %72 : vector<2x256xf32>
    %74 = vector.extract_strided_slice %73 {offsets = [0, 0], sizes = [2, 64], strides = [1, 1]} : vector<2x256xf32> to vector<2x64xf32>
    %cst_33 = arith.constant 5.000000e-01 : f32
    %75 = vector.broadcast %cst_33 : f32 to vector<2x64xf32>
    %76 = arith.mulf %75, %74 : vector<2x64xf32>
    %cst_34 = arith.constant 5.000000e-01 : f32
    %77 = vector.broadcast %cst_34 : f32 to vector<2x64xf32>
    %78 = arith.addf %76, %77 : vector<2x64xf32>
    %79 = vector.extract_strided_slice %73 {offsets = [0, 64], sizes = [2, 64], strides = [1, 1]} : vector<2x256xf32> to vector<2x64xf32>
    %cst_35 = arith.constant 5.000000e-01 : f32
    %80 = vector.broadcast %cst_35 : f32 to vector<2x64xf32>
    %81 = arith.mulf %80, %79 : vector<2x64xf32>
    %cst_36 = arith.constant 5.000000e-01 : f32
    %82 = vector.broadcast %cst_36 : f32 to vector<2x64xf32>
    %83 = arith.addf %81, %82 : vector<2x64xf32>
    %84 = vector.extract_strided_slice %73 {offsets = [0, 128], sizes = [2, 64], strides = [1, 1]} : vector<2x256xf32> to vector<2x64xf32>
    %85 = vector.extract_strided_slice %73 {offsets = [0, 192], sizes = [2, 64], strides = [1, 1]} : vector<2x256xf32> to vector<2x64xf32>
    %cst_37 = arith.constant 5.000000e-01 : f32
    %86 = vector.broadcast %cst_37 : f32 to vector<2x64xf32>
    %87 = arith.mulf %86, %85 : vector<2x64xf32>
    %cst_38 = arith.constant 5.000000e-01 : f32
    %88 = vector.broadcast %cst_38 : f32 to vector<2x64xf32>
    %89 = arith.addf %87, %88 : vector<2x64xf32>
    %90 = arith.mulf %83, %64 : vector<2x64xf32>
    %91 = arith.mulf %78, %84 : vector<2x64xf32>
    %92 = arith.addf %90, %91 : vector<2x64xf32>
    %93 = math.tanh %92 : vector<2x64xf32>
    %94 = arith.mulf %89, %93 : vector<2x64xf32>
    %c4 = arith.constant 4 : index
    %c0_39 = arith.constant 0 : index
    %95 = vector.load %arg7[%c4, %c0_39] : memref<16x64xf32, #tpu.memory_space<vmem>>, vector<2x64xf32>
    tpu.vector_store %arg7[%c4, %c0_39], %94 {strides = array<i32>} : memref<16x64xf32, #tpu.memory_space<vmem>>, vector<2x64xf32>,
    %96 = vector.extract_strided_slice %7 {offsets = [6, 0], sizes = [2, 256], strides = [1, 1]} : vector<16x256xf32> to vector<2x256xf32>
    %cst_40 = arith.constant dense<0.000000e+00> : vector<2x256xf32>
    %97 = tpu.matmul %94, %9, %cst_40 {dimension_numbers = #tpu.dot_dimension_numbers<[1], [0], [0], [1], [0, 0, 1, 1], [], []>} : vector<2x64xf32>, vector<64x256xf32>, vector<2x256xf32> -> vector<2x256xf32>
    %98 = arith.addf %96, %97 : vector<2x256xf32>
    %cst_41 = arith.constant 5.000000e-01 : f32
    %99 = vector.broadcast %cst_41 : f32 to vector<2x256xf32>
    %100 = arith.mulf %99, %98 : vector<2x256xf32>
    %101 = math.tanh %100 : vector<2x256xf32>
    %102 = vector.extract_strided_slice %101 {offsets = [0, 0], sizes = [2, 64], strides = [1, 1]} : vector<2x256xf32> to vector<2x64xf32>
    %cst_42 = arith.constant 5.000000e-01 : f32
    %103 = vector.broadcast %cst_42 : f32 to vector<2x64xf32>
    %104 = arith.mulf %103, %102 : vector<2x64xf32>
    %cst_43 = arith.constant 5.000000e-01 : f32
    %105 = vector.broadcast %cst_43 : f32 to vector<2x64xf32>
    %106 = arith.addf %104, %105 : vector<2x64xf32>
    %107 = vector.extract_strided_slice %101 {offsets = [0, 64], sizes = [2, 64], strides = [1, 1]} : vector<2x256xf32> to vector<2x64xf32>
    %cst_44 = arith.constant 5.000000e-01 : f32
    %108 = vector.broadcast %cst_44 : f32 to vector<2x64xf32>
    %109 = arith.mulf %108, %107 : vector<2x64xf32>
    %cst_45 = arith.constant 5.000000e-01 : f32
    %110 = vector.broadcast %cst_45 : f32 to vector<2x64xf32>
    %111 = arith.addf %109, %110 : vector<2x64xf32>
    %112 = vector.extract_strided_slice %101 {offsets = [0, 128], sizes = [2, 64], strides = [1, 1]} : vector<2x256xf32> to vector<2x64xf32>
    %113 = vector.extract_strided_slice %101 {offsets = [0, 192], sizes = [2, 64], strides = [1, 1]} : vector<2x256xf32> to vector<2x64xf32>
    %cst_46 = arith.constant 5.000000e-01 : f32
    %114 = vector.broadcast %cst_46 : f32 to vector<2x64xf32>
    %115 = arith.mulf %114, %113 : vector<2x64xf32>
    %cst_47 = arith.constant 5.000000e-01 : f32
    %116 = vector.broadcast %cst_47 : f32 to vector<2x64xf32>
    %117 = arith.addf %115, %116 : vector<2x64xf32>
    %118 = arith.mulf %111, %92 : vector<2x64xf32>
    %119 = arith.mulf %106, %112 : vector<2x64xf32>
    %120 = arith.addf %118, %119 : vector<2x64xf32>
    %121 = math.tanh %120 : vector<2x64xf32>
    %122 = arith.mulf %117, %121 : vector<2x64xf32>
    %c6 = arith.constant 6 : index
    %c0_48 = arith.constant 0 : index
    %123 = vector.load %arg7[%c6, %c0_48] : memref<16x64xf32, #tpu.memory_space<vmem>>, vector<2x64xf32>
    tpu.vector_store %arg7[%c6, %c0_48], %122 {strides = array<i32>} : memref<16x64xf32, #tpu.memory_space<vmem>>, vector<2x64xf32>,
    %124 = vector.extract_strided_slice %7 {offsets = [8, 0], sizes = [2, 256], strides = [1, 1]} : vector<16x256xf32> to vector<2x256xf32>
    %cst_49 = arith.constant dense<0.000000e+00> : vector<2x256xf32>
    %125 = tpu.matmul %122, %9, %cst_49 {dimension_numbers = #tpu.dot_dimension_numbers<[1], [0], [0], [1], [0, 0, 1, 1], [], []>} : vector<2x64xf32>, vector<64x256xf32>, vector<2x256xf32> -> vector<2x256xf32>
    %126 = arith.addf %124, %125 : vector<2x256xf32>
    %cst_50 = arith.constant 5.000000e-01 : f32
    %127 = vector.broadcast %cst_50 : f32 to vector<2x256xf32>
    %128 = arith.mulf %127, %126 : vector<2x256xf32>
    %129 = math.tanh %128 : vector<2x256xf32>
    %130 = vector.extract_strided_slice %129 {offsets = [0, 0], sizes = [2, 64], strides = [1, 1]} : vector<2x256xf32> to vector<2x64xf32>
    %cst_51 = arith.constant 5.000000e-01 : f32
    %131 = vector.broadcast %cst_51 : f32 to vector<2x64xf32>
    %132 = arith.mulf %131, %130 : vector<2x64xf32>
    %cst_52 = arith.constant 5.000000e-01 : f32
    %133 = vector.broadcast %cst_52 : f32 to vector<2x64xf32>
    %134 = arith.addf %132, %133 : vector<2x64xf32>
    %135 = vector.extract_strided_slice %129 {offsets = [0, 64], sizes = [2, 64], strides = [1, 1]} : vector<2x256xf32> to vector<2x64xf32>
    %cst_53 = arith.constant 5.000000e-01 : f32
    %136 = vector.broadcast %cst_53 : f32 to vector<2x64xf32>
    %137 = arith.mulf %136, %135 : vector<2x64xf32>
    %cst_54 = arith.constant 5.000000e-01 : f32
    %138 = vector.broadcast %cst_54 : f32 to vector<2x64xf32>
    %139 = arith.addf %137, %138 : vector<2x64xf32>
    %140 = vector.extract_strided_slice %129 {offsets = [0, 128], sizes = [2, 64], strides = [1, 1]} : vector<2x256xf32> to vector<2x64xf32>
    %141 = vector.extract_strided_slice %129 {offsets = [0, 192], sizes = [2, 64], strides = [1, 1]} : vector<2x256xf32> to vector<2x64xf32>
    %cst_55 = arith.constant 5.000000e-01 : f32
    %142 = vector.broadcast %cst_55 : f32 to vector<2x64xf32>
    %143 = arith.mulf %142, %141 : vector<2x64xf32>
    %cst_56 = arith.constant 5.000000e-01 : f32
    %144 = vector.broadcast %cst_56 : f32 to vector<2x64xf32>
    %145 = arith.addf %143, %144 : vector<2x64xf32>
    %146 = arith.mulf %139, %120 : vector<2x64xf32>
    %147 = arith.mulf %134, %140 : vector<2x64xf32>
    %148 = arith.addf %146, %147 : vector<2x64xf32>
    %149 = math.tanh %148 : vector<2x64xf32>
    %150 = arith.mulf %145, %149 : vector<2x64xf32>
    %c8 = arith.constant 8 : index
    %c0_57 = arith.constant 0 : index
    %151 = vector.load %arg7[%c8, %c0_57] : memref<16x64xf32, #tpu.memory_space<vmem>>, vector<2x64xf32>
    tpu.vector_store %arg7[%c8, %c0_57], %150 {strides = array<i32>} : memref<16x64xf32, #tpu.memory_space<vmem>>, vector<2x64xf32>,
    %152 = vector.extract_strided_slice %7 {offsets = [10, 0], sizes = [2, 256], strides = [1, 1]} : vector<16x256xf32> to vector<2x256xf32>
    %cst_58 = arith.constant dense<0.000000e+00> : vector<2x256xf32>
    %153 = tpu.matmul %150, %9, %cst_58 {dimension_numbers = #tpu.dot_dimension_numbers<[1], [0], [0], [1], [0, 0, 1, 1], [], []>} : vector<2x64xf32>, vector<64x256xf32>, vector<2x256xf32> -> vector<2x256xf32>
    %154 = arith.addf %152, %153 : vector<2x256xf32>
    %cst_59 = arith.constant 5.000000e-01 : f32
    %155 = vector.broadcast %cst_59 : f32 to vector<2x256xf32>
    %156 = arith.mulf %155, %154 : vector<2x256xf32>
    %157 = math.tanh %156 : vector<2x256xf32>
    %158 = vector.extract_strided_slice %157 {offsets = [0, 0], sizes = [2, 64], strides = [1, 1]} : vector<2x256xf32> to vector<2x64xf32>
    %cst_60 = arith.constant 5.000000e-01 : f32
    %159 = vector.broadcast %cst_60 : f32 to vector<2x64xf32>
    %160 = arith.mulf %159, %158 : vector<2x64xf32>
    %cst_61 = arith.constant 5.000000e-01 : f32
    %161 = vector.broadcast %cst_61 : f32 to vector<2x64xf32>
    %162 = arith.addf %160, %161 : vector<2x64xf32>
    %163 = vector.extract_strided_slice %157 {offsets = [0, 64], sizes = [2, 64], strides = [1, 1]} : vector<2x256xf32> to vector<2x64xf32>
    %cst_62 = arith.constant 5.000000e-01 : f32
    %164 = vector.broadcast %cst_62 : f32 to vector<2x64xf32>
    %165 = arith.mulf %164, %163 : vector<2x64xf32>
    %cst_63 = arith.constant 5.000000e-01 : f32
    %166 = vector.broadcast %cst_63 : f32 to vector<2x64xf32>
    %167 = arith.addf %165, %166 : vector<2x64xf32>
    %168 = vector.extract_strided_slice %157 {offsets = [0, 128], sizes = [2, 64], strides = [1, 1]} : vector<2x256xf32> to vector<2x64xf32>
    %169 = vector.extract_strided_slice %157 {offsets = [0, 192], sizes = [2, 64], strides = [1, 1]} : vector<2x256xf32> to vector<2x64xf32>
    %cst_64 = arith.constant 5.000000e-01 : f32
    %170 = vector.broadcast %cst_64 : f32 to vector<2x64xf32>
    %171 = arith.mulf %170, %169 : vector<2x64xf32>
    %cst_65 = arith.constant 5.000000e-01 : f32
    %172 = vector.broadcast %cst_65 : f32 to vector<2x64xf32>
    %173 = arith.addf %171, %172 : vector<2x64xf32>
    %174 = arith.mulf %167, %148 : vector<2x64xf32>
    %175 = arith.mulf %162, %168 : vector<2x64xf32>
    %176 = arith.addf %174, %175 : vector<2x64xf32>
    %177 = math.tanh %176 : vector<2x64xf32>
    %178 = arith.mulf %173, %177 : vector<2x64xf32>
    %c10 = arith.constant 10 : index
    %c0_66 = arith.constant 0 : index
    %179 = vector.load %arg7[%c10, %c0_66] : memref<16x64xf32, #tpu.memory_space<vmem>>, vector<2x64xf32>
    tpu.vector_store %arg7[%c10, %c0_66], %178 {strides = array<i32>} : memref<16x64xf32, #tpu.memory_space<vmem>>, vector<2x64xf32>,
    %180 = vector.extract_strided_slice %7 {offsets = [12, 0], sizes = [2, 256], strides = [1, 1]} : vector<16x256xf32> to vector<2x256xf32>
    %cst_67 = arith.constant dense<0.000000e+00> : vector<2x256xf32>
    %181 = tpu.matmul %178, %9, %cst_67 {dimension_numbers = #tpu.dot_dimension_numbers<[1], [0], [0], [1], [0, 0, 1, 1], [], []>} : vector<2x64xf32>, vector<64x256xf32>, vector<2x256xf32> -> vector<2x256xf32>
    %182 = arith.addf %180, %181 : vector<2x256xf32>
    %cst_68 = arith.constant 5.000000e-01 : f32
    %183 = vector.broadcast %cst_68 : f32 to vector<2x256xf32>
    %184 = arith.mulf %183, %182 : vector<2x256xf32>
    %185 = math.tanh %184 : vector<2x256xf32>
    %186 = vector.extract_strided_slice %185 {offsets = [0, 0], sizes = [2, 64], strides = [1, 1]} : vector<2x256xf32> to vector<2x64xf32>
    %cst_69 = arith.constant 5.000000e-01 : f32
    %187 = vector.broadcast %cst_69 : f32 to vector<2x64xf32>
    %188 = arith.mulf %187, %186 : vector<2x64xf32>
    %cst_70 = arith.constant 5.000000e-01 : f32
    %189 = vector.broadcast %cst_70 : f32 to vector<2x64xf32>
    %190 = arith.addf %188, %189 : vector<2x64xf32>
    %191 = vector.extract_strided_slice %185 {offsets = [0, 64], sizes = [2, 64], strides = [1, 1]} : vector<2x256xf32> to vector<2x64xf32>
    %cst_71 = arith.constant 5.000000e-01 : f32
    %192 = vector.broadcast %cst_71 : f32 to vector<2x64xf32>
    %193 = arith.mulf %192, %191 : vector<2x64xf32>
    %cst_72 = arith.constant 5.000000e-01 : f32
    %194 = vector.broadcast %cst_72 : f32 to vector<2x64xf32>
    %195 = arith.addf %193, %194 : vector<2x64xf32>
    %196 = vector.extract_strided_slice %185 {offsets = [0, 128], sizes = [2, 64], strides = [1, 1]} : vector<2x256xf32> to vector<2x64xf32>
    %197 = vector.extract_strided_slice %185 {offsets = [0, 192], sizes = [2, 64], strides = [1, 1]} : vector<2x256xf32> to vector<2x64xf32>
    %cst_73 = arith.constant 5.000000e-01 : f32
    %198 = vector.broadcast %cst_73 : f32 to vector<2x64xf32>
    %199 = arith.mulf %198, %197 : vector<2x64xf32>
    %cst_74 = arith.constant 5.000000e-01 : f32
    %200 = vector.broadcast %cst_74 : f32 to vector<2x64xf32>
    %201 = arith.addf %199, %200 : vector<2x64xf32>
    %202 = arith.mulf %195, %176 : vector<2x64xf32>
    %203 = arith.mulf %190, %196 : vector<2x64xf32>
    %204 = arith.addf %202, %203 : vector<2x64xf32>
    %205 = math.tanh %204 : vector<2x64xf32>
    %206 = arith.mulf %201, %205 : vector<2x64xf32>
    %c12 = arith.constant 12 : index
    %c0_75 = arith.constant 0 : index
    %207 = vector.load %arg7[%c12, %c0_75] : memref<16x64xf32, #tpu.memory_space<vmem>>, vector<2x64xf32>
    tpu.vector_store %arg7[%c12, %c0_75], %206 {strides = array<i32>} : memref<16x64xf32, #tpu.memory_space<vmem>>, vector<2x64xf32>,
    %208 = vector.extract_strided_slice %7 {offsets = [14, 0], sizes = [2, 256], strides = [1, 1]} : vector<16x256xf32> to vector<2x256xf32>
    %cst_76 = arith.constant dense<0.000000e+00> : vector<2x256xf32>
    %209 = tpu.matmul %206, %9, %cst_76 {dimension_numbers = #tpu.dot_dimension_numbers<[1], [0], [0], [1], [0, 0, 1, 1], [], []>} : vector<2x64xf32>, vector<64x256xf32>, vector<2x256xf32> -> vector<2x256xf32>
    %210 = arith.addf %208, %209 : vector<2x256xf32>
    %cst_77 = arith.constant 5.000000e-01 : f32
    %211 = vector.broadcast %cst_77 : f32 to vector<2x256xf32>
    %212 = arith.mulf %211, %210 : vector<2x256xf32>
    %213 = math.tanh %212 : vector<2x256xf32>
    %214 = vector.extract_strided_slice %213 {offsets = [0, 0], sizes = [2, 64], strides = [1, 1]} : vector<2x256xf32> to vector<2x64xf32>
    %cst_78 = arith.constant 5.000000e-01 : f32
    %215 = vector.broadcast %cst_78 : f32 to vector<2x64xf32>
    %216 = arith.mulf %215, %214 : vector<2x64xf32>
    %cst_79 = arith.constant 5.000000e-01 : f32
    %217 = vector.broadcast %cst_79 : f32 to vector<2x64xf32>
    %218 = arith.addf %216, %217 : vector<2x64xf32>
    %219 = vector.extract_strided_slice %213 {offsets = [0, 64], sizes = [2, 64], strides = [1, 1]} : vector<2x256xf32> to vector<2x64xf32>
    %cst_80 = arith.constant 5.000000e-01 : f32
    %220 = vector.broadcast %cst_80 : f32 to vector<2x64xf32>
    %221 = arith.mulf %220, %219 : vector<2x64xf32>
    %cst_81 = arith.constant 5.000000e-01 : f32
    %222 = vector.broadcast %cst_81 : f32 to vector<2x64xf32>
    %223 = arith.addf %221, %222 : vector<2x64xf32>
    %224 = vector.extract_strided_slice %213 {offsets = [0, 128], sizes = [2, 64], strides = [1, 1]} : vector<2x256xf32> to vector<2x64xf32>
    %225 = vector.extract_strided_slice %213 {offsets = [0, 192], sizes = [2, 64], strides = [1, 1]} : vector<2x256xf32> to vector<2x64xf32>
    %cst_82 = arith.constant 5.000000e-01 : f32
    %226 = vector.broadcast %cst_82 : f32 to vector<2x64xf32>
    %227 = arith.mulf %226, %225 : vector<2x64xf32>
    %cst_83 = arith.constant 5.000000e-01 : f32
    %228 = vector.broadcast %cst_83 : f32 to vector<2x64xf32>
    %229 = arith.addf %227, %228 : vector<2x64xf32>
    %230 = arith.mulf %223, %204 : vector<2x64xf32>
    %231 = arith.mulf %218, %224 : vector<2x64xf32>
    %232 = arith.addf %230, %231 : vector<2x64xf32>
    %233 = math.tanh %232 : vector<2x64xf32>
    %234 = arith.mulf %229, %233 : vector<2x64xf32>
    %c14 = arith.constant 14 : index
    %c0_84 = arith.constant 0 : index
    %235 = vector.load %arg7[%c14, %c0_84] : memref<16x64xf32, #tpu.memory_space<vmem>>, vector<2x64xf32>
    tpu.vector_store %arg7[%c14, %c0_84], %234 {strides = array<i32>} : memref<16x64xf32, #tpu.memory_space<vmem>>, vector<2x64xf32>,
    %c0_85 = arith.constant 0 : index
    %c0_86 = arith.constant 0 : index
    %236 = vector.load %arg7[%c0_85, %c0_86] : memref<16x64xf32, #tpu.memory_space<vmem>>, vector<16x64xf32>
    %c1 = arith.constant 1 : index
    %c0_87 = arith.constant 0 : index
    %c0_88 = arith.constant 0 : index
    %237 = vector.load %arg1[%c1, %c0_87, %c0_88] : memref<2x64x256xf32, #tpu.memory_space<vmem>>, vector<1x64x256xf32>
    %238 = vector.shape_cast %237 : vector<1x64x256xf32> to vector<64x256xf32>
    %cst_89 = arith.constant dense<0.000000e+00> : vector<16x256xf32>
    %239 = tpu.matmul %236, %238, %cst_89 {dimension_numbers = #tpu.dot_dimension_numbers<[1], [0], [0], [1], [0, 0, 1, 1], [], []>} : vector<16x64xf32>, vector<64x256xf32>, vector<16x256xf32> -> vector<16x256xf32>
    %c1_90 = arith.constant 1 : index
    %c0_91 = arith.constant 0 : index
    %c0_92 = arith.constant 0 : index
    %240 = vector.load %arg3[%c1_90, %c0_91, %c0_92] : memref<2x1x256xf32, #tpu.memory_space<vmem>>, vector<1x1x256xf32>
    %241 = vector.shape_cast %240 : vector<1x1x256xf32> to vector<1x256xf32>
    %242 = vector.broadcast %241 : vector<1x256xf32> to vector<16x256xf32>
    %243 = arith.addf %239, %242 : vector<16x256xf32>
    %c1_93 = arith.constant 1 : index
    %c0_94 = arith.constant 0 : index
    %c0_95 = arith.constant 0 : index
    %244 = vector.load %arg2[%c1_93, %c0_94, %c0_95] : memref<2x64x256xf32, #tpu.memory_space<vmem>>, vector<1x64x256xf32>
    %245 = vector.shape_cast %244 : vector<1x64x256xf32> to vector<64x256xf32>
    %cst_96 = arith.constant 0.000000e+00 : f32
    %246 = vector.broadcast %cst_96 : f32 to vector<2x64xf32>
    %cst_97 = arith.constant 0.000000e+00 : f32
    %247 = vector.broadcast %cst_97 : f32 to vector<2x64xf32>
    %248 = vector.extract_strided_slice %243 {offsets = [0, 0], sizes = [2, 256], strides = [1, 1]} : vector<16x256xf32> to vector<2x256xf32>
    %cst_98 = arith.constant dense<0.000000e+00> : vector<2x256xf32>
    %249 = tpu.matmul %246, %245, %cst_98 {dimension_numbers = #tpu.dot_dimension_numbers<[1], [0], [0], [1], [0, 0, 1, 1], [], []>} : vector<2x64xf32>, vector<64x256xf32>, vector<2x256xf32> -> vector<2x256xf32>
    %250 = arith.addf %248, %249 : vector<2x256xf32>
    %cst_99 = arith.constant 5.000000e-01 : f32
    %251 = vector.broadcast %cst_99 : f32 to vector<2x256xf32>
    %252 = arith.mulf %251, %250 : vector<2x256xf32>
    %253 = math.tanh %252 : vector<2x256xf32>
    %254 = vector.extract_strided_slice %253 {offsets = [0, 0], sizes = [2, 64], strides = [1, 1]} : vector<2x256xf32> to vector<2x64xf32>
    %cst_100 = arith.constant 5.000000e-01 : f32
    %255 = vector.broadcast %cst_100 : f32 to vector<2x64xf32>
    %256 = arith.mulf %255, %254 : vector<2x64xf32>
    %cst_101 = arith.constant 5.000000e-01 : f32
    %257 = vector.broadcast %cst_101 : f32 to vector<2x64xf32>
    %258 = arith.addf %256, %257 : vector<2x64xf32>
    %259 = vector.extract_strided_slice %253 {offsets = [0, 64], sizes = [2, 64], strides = [1, 1]} : vector<2x256xf32> to vector<2x64xf32>
    %cst_102 = arith.constant 5.000000e-01 : f32
    %260 = vector.broadcast %cst_102 : f32 to vector<2x64xf32>
    %261 = arith.mulf %260, %259 : vector<2x64xf32>
    %cst_103 = arith.constant 5.000000e-01 : f32
    %262 = vector.broadcast %cst_103 : f32 to vector<2x64xf32>
    %263 = arith.addf %261, %262 : vector<2x64xf32>
    %264 = vector.extract_strided_slice %253 {offsets = [0, 128], sizes = [2, 64], strides = [1, 1]} : vector<2x256xf32> to vector<2x64xf32>
    %265 = vector.extract_strided_slice %253 {offsets = [0, 192], sizes = [2, 64], strides = [1, 1]} : vector<2x256xf32> to vector<2x64xf32>
    %cst_104 = arith.constant 5.000000e-01 : f32
    %266 = vector.broadcast %cst_104 : f32 to vector<2x64xf32>
    %267 = arith.mulf %266, %265 : vector<2x64xf32>
    %cst_105 = arith.constant 5.000000e-01 : f32
    %268 = vector.broadcast %cst_105 : f32 to vector<2x64xf32>
    %269 = arith.addf %267, %268 : vector<2x64xf32>
    %270 = arith.mulf %263, %247 : vector<2x64xf32>
    %271 = arith.mulf %258, %264 : vector<2x64xf32>
    %272 = arith.addf %270, %271 : vector<2x64xf32>
    %273 = math.tanh %272 : vector<2x64xf32>
    %274 = arith.mulf %269, %273 : vector<2x64xf32>
    %275 = vector.extract_strided_slice %243 {offsets = [2, 0], sizes = [2, 256], strides = [1, 1]} : vector<16x256xf32> to vector<2x256xf32>
    %cst_106 = arith.constant dense<0.000000e+00> : vector<2x256xf32>
    %276 = tpu.matmul %274, %245, %cst_106 {dimension_numbers = #tpu.dot_dimension_numbers<[1], [0], [0], [1], [0, 0, 1, 1], [], []>} : vector<2x64xf32>, vector<64x256xf32>, vector<2x256xf32> -> vector<2x256xf32>
    %277 = arith.addf %275, %276 : vector<2x256xf32>
    %cst_107 = arith.constant 5.000000e-01 : f32
    %278 = vector.broadcast %cst_107 : f32 to vector<2x256xf32>
    %279 = arith.mulf %278, %277 : vector<2x256xf32>
    %280 = math.tanh %279 : vector<2x256xf32>
    %281 = vector.extract_strided_slice %280 {offsets = [0, 0], sizes = [2, 64], strides = [1, 1]} : vector<2x256xf32> to vector<2x64xf32>
    %cst_108 = arith.constant 5.000000e-01 : f32
    %282 = vector.broadcast %cst_108 : f32 to vector<2x64xf32>
    %283 = arith.mulf %282, %281 : vector<2x64xf32>
    %cst_109 = arith.constant 5.000000e-01 : f32
    %284 = vector.broadcast %cst_109 : f32 to vector<2x64xf32>
    %285 = arith.addf %283, %284 : vector<2x64xf32>
    %286 = vector.extract_strided_slice %280 {offsets = [0, 64], sizes = [2, 64], strides = [1, 1]} : vector<2x256xf32> to vector<2x64xf32>
    %cst_110 = arith.constant 5.000000e-01 : f32
    %287 = vector.broadcast %cst_110 : f32 to vector<2x64xf32>
    %288 = arith.mulf %287, %286 : vector<2x64xf32>
    %cst_111 = arith.constant 5.000000e-01 : f32
    %289 = vector.broadcast %cst_111 : f32 to vector<2x64xf32>
    %290 = arith.addf %288, %289 : vector<2x64xf32>
    %291 = vector.extract_strided_slice %280 {offsets = [0, 128], sizes = [2, 64], strides = [1, 1]} : vector<2x256xf32> to vector<2x64xf32>
    %292 = vector.extract_strided_slice %280 {offsets = [0, 192], sizes = [2, 64], strides = [1, 1]} : vector<2x256xf32> to vector<2x64xf32>
    %cst_112 = arith.constant 5.000000e-01 : f32
    %293 = vector.broadcast %cst_112 : f32 to vector<2x64xf32>
    %294 = arith.mulf %293, %292 : vector<2x64xf32>
    %cst_113 = arith.constant 5.000000e-01 : f32
    %295 = vector.broadcast %cst_113 : f32 to vector<2x64xf32>
    %296 = arith.addf %294, %295 : vector<2x64xf32>
    %297 = arith.mulf %290, %272 : vector<2x64xf32>
    %298 = arith.mulf %285, %291 : vector<2x64xf32>
    %299 = arith.addf %297, %298 : vector<2x64xf32>
    %300 = math.tanh %299 : vector<2x64xf32>
    %301 = arith.mulf %296, %300 : vector<2x64xf32>
    %302 = vector.extract_strided_slice %243 {offsets = [4, 0], sizes = [2, 256], strides = [1, 1]} : vector<16x256xf32> to vector<2x256xf32>
    %cst_114 = arith.constant dense<0.000000e+00> : vector<2x256xf32>
    %303 = tpu.matmul %301, %245, %cst_114 {dimension_numbers = #tpu.dot_dimension_numbers<[1], [0], [0], [1], [0, 0, 1, 1], [], []>} : vector<2x64xf32>, vector<64x256xf32>, vector<2x256xf32> -> vector<2x256xf32>
    %304 = arith.addf %302, %303 : vector<2x256xf32>
    %cst_115 = arith.constant 5.000000e-01 : f32
    %305 = vector.broadcast %cst_115 : f32 to vector<2x256xf32>
    %306 = arith.mulf %305, %304 : vector<2x256xf32>
    %307 = math.tanh %306 : vector<2x256xf32>
    %308 = vector.extract_strided_slice %307 {offsets = [0, 0], sizes = [2, 64], strides = [1, 1]} : vector<2x256xf32> to vector<2x64xf32>
    %cst_116 = arith.constant 5.000000e-01 : f32
    %309 = vector.broadcast %cst_116 : f32 to vector<2x64xf32>
    %310 = arith.mulf %309, %308 : vector<2x64xf32>
    %cst_117 = arith.constant 5.000000e-01 : f32
    %311 = vector.broadcast %cst_117 : f32 to vector<2x64xf32>
    %312 = arith.addf %310, %311 : vector<2x64xf32>
    %313 = vector.extract_strided_slice %307 {offsets = [0, 64], sizes = [2, 64], strides = [1, 1]} : vector<2x256xf32> to vector<2x64xf32>
    %cst_118 = arith.constant 5.000000e-01 : f32
    %314 = vector.broadcast %cst_118 : f32 to vector<2x64xf32>
    %315 = arith.mulf %314, %313 : vector<2x64xf32>
    %cst_119 = arith.constant 5.000000e-01 : f32
    %316 = vector.broadcast %cst_119 : f32 to vector<2x64xf32>
    %317 = arith.addf %315, %316 : vector<2x64xf32>
    %318 = vector.extract_strided_slice %307 {offsets = [0, 128], sizes = [2, 64], strides = [1, 1]} : vector<2x256xf32> to vector<2x64xf32>
    %319 = vector.extract_strided_slice %307 {offsets = [0, 192], sizes = [2, 64], strides = [1, 1]} : vector<2x256xf32> to vector<2x64xf32>
    %cst_120 = arith.constant 5.000000e-01 : f32
    %320 = vector.broadcast %cst_120 : f32 to vector<2x64xf32>
    %321 = arith.mulf %320, %319 : vector<2x64xf32>
    %cst_121 = arith.constant 5.000000e-01 : f32
    %322 = vector.broadcast %cst_121 : f32 to vector<2x64xf32>
    %323 = arith.addf %321, %322 : vector<2x64xf32>
    %324 = arith.mulf %317, %299 : vector<2x64xf32>
    %325 = arith.mulf %312, %318 : vector<2x64xf32>
    %326 = arith.addf %324, %325 : vector<2x64xf32>
    %327 = math.tanh %326 : vector<2x64xf32>
    %328 = arith.mulf %323, %327 : vector<2x64xf32>
    %329 = vector.extract_strided_slice %243 {offsets = [6, 0], sizes = [2, 256], strides = [1, 1]} : vector<16x256xf32> to vector<2x256xf32>
    %cst_122 = arith.constant dense<0.000000e+00> : vector<2x256xf32>
    %330 = tpu.matmul %328, %245, %cst_122 {dimension_numbers = #tpu.dot_dimension_numbers<[1], [0], [0], [1], [0, 0, 1, 1], [], []>} : vector<2x64xf32>, vector<64x256xf32>, vector<2x256xf32> -> vector<2x256xf32>
    %331 = arith.addf %329, %330 : vector<2x256xf32>
    %cst_123 = arith.constant 5.000000e-01 : f32
    %332 = vector.broadcast %cst_123 : f32 to vector<2x256xf32>
    %333 = arith.mulf %332, %331 : vector<2x256xf32>
    %334 = math.tanh %333 : vector<2x256xf32>
    %335 = vector.extract_strided_slice %334 {offsets = [0, 0], sizes = [2, 64], strides = [1, 1]} : vector<2x256xf32> to vector<2x64xf32>
    %cst_124 = arith.constant 5.000000e-01 : f32
    %336 = vector.broadcast %cst_124 : f32 to vector<2x64xf32>
    %337 = arith.mulf %336, %335 : vector<2x64xf32>
    %cst_125 = arith.constant 5.000000e-01 : f32
    %338 = vector.broadcast %cst_125 : f32 to vector<2x64xf32>
    %339 = arith.addf %337, %338 : vector<2x64xf32>
    %340 = vector.extract_strided_slice %334 {offsets = [0, 64], sizes = [2, 64], strides = [1, 1]} : vector<2x256xf32> to vector<2x64xf32>
    %cst_126 = arith.constant 5.000000e-01 : f32
    %341 = vector.broadcast %cst_126 : f32 to vector<2x64xf32>
    %342 = arith.mulf %341, %340 : vector<2x64xf32>
    %cst_127 = arith.constant 5.000000e-01 : f32
    %343 = vector.broadcast %cst_127 : f32 to vector<2x64xf32>
    %344 = arith.addf %342, %343 : vector<2x64xf32>
    %345 = vector.extract_strided_slice %334 {offsets = [0, 128], sizes = [2, 64], strides = [1, 1]} : vector<2x256xf32> to vector<2x64xf32>
    %346 = vector.extract_strided_slice %334 {offsets = [0, 192], sizes = [2, 64], strides = [1, 1]} : vector<2x256xf32> to vector<2x64xf32>
    %cst_128 = arith.constant 5.000000e-01 : f32
    %347 = vector.broadcast %cst_128 : f32 to vector<2x64xf32>
    %348 = arith.mulf %347, %346 : vector<2x64xf32>
    %cst_129 = arith.constant 5.000000e-01 : f32
    %349 = vector.broadcast %cst_129 : f32 to vector<2x64xf32>
    %350 = arith.addf %348, %349 : vector<2x64xf32>
    %351 = arith.mulf %344, %326 : vector<2x64xf32>
    %352 = arith.mulf %339, %345 : vector<2x64xf32>
    %353 = arith.addf %351, %352 : vector<2x64xf32>
    %354 = math.tanh %353 : vector<2x64xf32>
    %355 = arith.mulf %350, %354 : vector<2x64xf32>
    %356 = vector.extract_strided_slice %243 {offsets = [8, 0], sizes = [2, 256], strides = [1, 1]} : vector<16x256xf32> to vector<2x256xf32>
    %cst_130 = arith.constant dense<0.000000e+00> : vector<2x256xf32>
    %357 = tpu.matmul %355, %245, %cst_130 {dimension_numbers = #tpu.dot_dimension_numbers<[1], [0], [0], [1], [0, 0, 1, 1], [], []>} : vector<2x64xf32>, vector<64x256xf32>, vector<2x256xf32> -> vector<2x256xf32>
    %358 = arith.addf %356, %357 : vector<2x256xf32>
    %cst_131 = arith.constant 5.000000e-01 : f32
    %359 = vector.broadcast %cst_131 : f32 to vector<2x256xf32>
    %360 = arith.mulf %359, %358 : vector<2x256xf32>
    %361 = math.tanh %360 : vector<2x256xf32>
    %362 = vector.extract_strided_slice %361 {offsets = [0, 0], sizes = [2, 64], strides = [1, 1]} : vector<2x256xf32> to vector<2x64xf32>
    %cst_132 = arith.constant 5.000000e-01 : f32
    %363 = vector.broadcast %cst_132 : f32 to vector<2x64xf32>
    %364 = arith.mulf %363, %362 : vector<2x64xf32>
    %cst_133 = arith.constant 5.000000e-01 : f32
    %365 = vector.broadcast %cst_133 : f32 to vector<2x64xf32>
    %366 = arith.addf %364, %365 : vector<2x64xf32>
    %367 = vector.extract_strided_slice %361 {offsets = [0, 64], sizes = [2, 64], strides = [1, 1]} : vector<2x256xf32> to vector<2x64xf32>
    %cst_134 = arith.constant 5.000000e-01 : f32
    %368 = vector.broadcast %cst_134 : f32 to vector<2x64xf32>
    %369 = arith.mulf %368, %367 : vector<2x64xf32>
    %cst_135 = arith.constant 5.000000e-01 : f32
    %370 = vector.broadcast %cst_135 : f32 to vector<2x64xf32>
    %371 = arith.addf %369, %370 : vector<2x64xf32>
    %372 = vector.extract_strided_slice %361 {offsets = [0, 128], sizes = [2, 64], strides = [1, 1]} : vector<2x256xf32> to vector<2x64xf32>
    %373 = vector.extract_strided_slice %361 {offsets = [0, 192], sizes = [2, 64], strides = [1, 1]} : vector<2x256xf32> to vector<2x64xf32>
    %cst_136 = arith.constant 5.000000e-01 : f32
    %374 = vector.broadcast %cst_136 : f32 to vector<2x64xf32>
    %375 = arith.mulf %374, %373 : vector<2x64xf32>
    %cst_137 = arith.constant 5.000000e-01 : f32
    %376 = vector.broadcast %cst_137 : f32 to vector<2x64xf32>
    %377 = arith.addf %375, %376 : vector<2x64xf32>
    %378 = arith.mulf %371, %353 : vector<2x64xf32>
    %379 = arith.mulf %366, %372 : vector<2x64xf32>
    %380 = arith.addf %378, %379 : vector<2x64xf32>
    %381 = math.tanh %380 : vector<2x64xf32>
    %382 = arith.mulf %377, %381 : vector<2x64xf32>
    %383 = vector.extract_strided_slice %243 {offsets = [10, 0], sizes = [2, 256], strides = [1, 1]} : vector<16x256xf32> to vector<2x256xf32>
    %cst_138 = arith.constant dense<0.000000e+00> : vector<2x256xf32>
    %384 = tpu.matmul %382, %245, %cst_138 {dimension_numbers = #tpu.dot_dimension_numbers<[1], [0], [0], [1], [0, 0, 1, 1], [], []>} : vector<2x64xf32>, vector<64x256xf32>, vector<2x256xf32> -> vector<2x256xf32>
    %385 = arith.addf %383, %384 : vector<2x256xf32>
    %cst_139 = arith.constant 5.000000e-01 : f32
    %386 = vector.broadcast %cst_139 : f32 to vector<2x256xf32>
    %387 = arith.mulf %386, %385 : vector<2x256xf32>
    %388 = math.tanh %387 : vector<2x256xf32>
    %389 = vector.extract_strided_slice %388 {offsets = [0, 0], sizes = [2, 64], strides = [1, 1]} : vector<2x256xf32> to vector<2x64xf32>
    %cst_140 = arith.constant 5.000000e-01 : f32
    %390 = vector.broadcast %cst_140 : f32 to vector<2x64xf32>
    %391 = arith.mulf %390, %389 : vector<2x64xf32>
    %cst_141 = arith.constant 5.000000e-01 : f32
    %392 = vector.broadcast %cst_141 : f32 to vector<2x64xf32>
    %393 = arith.addf %391, %392 : vector<2x64xf32>
    %394 = vector.extract_strided_slice %388 {offsets = [0, 64], sizes = [2, 64], strides = [1, 1]} : vector<2x256xf32> to vector<2x64xf32>
    %cst_142 = arith.constant 5.000000e-01 : f32
    %395 = vector.broadcast %cst_142 : f32 to vector<2x64xf32>
    %396 = arith.mulf %395, %394 : vector<2x64xf32>
    %cst_143 = arith.constant 5.000000e-01 : f32
    %397 = vector.broadcast %cst_143 : f32 to vector<2x64xf32>
    %398 = arith.addf %396, %397 : vector<2x64xf32>
    %399 = vector.extract_strided_slice %388 {offsets = [0, 128], sizes = [2, 64], strides = [1, 1]} : vector<2x256xf32> to vector<2x64xf32>
    %400 = vector.extract_strided_slice %388 {offsets = [0, 192], sizes = [2, 64], strides = [1, 1]} : vector<2x256xf32> to vector<2x64xf32>
    %cst_144 = arith.constant 5.000000e-01 : f32
    %401 = vector.broadcast %cst_144 : f32 to vector<2x64xf32>
    %402 = arith.mulf %401, %400 : vector<2x64xf32>
    %cst_145 = arith.constant 5.000000e-01 : f32
    %403 = vector.broadcast %cst_145 : f32 to vector<2x64xf32>
    %404 = arith.addf %402, %403 : vector<2x64xf32>
    %405 = arith.mulf %398, %380 : vector<2x64xf32>
    %406 = arith.mulf %393, %399 : vector<2x64xf32>
    %407 = arith.addf %405, %406 : vector<2x64xf32>
    %408 = math.tanh %407 : vector<2x64xf32>
    %409 = arith.mulf %404, %408 : vector<2x64xf32>
    %410 = vector.extract_strided_slice %243 {offsets = [12, 0], sizes = [2, 256], strides = [1, 1]} : vector<16x256xf32> to vector<2x256xf32>
    %cst_146 = arith.constant dense<0.000000e+00> : vector<2x256xf32>
    %411 = tpu.matmul %409, %245, %cst_146 {dimension_numbers = #tpu.dot_dimension_numbers<[1], [0], [0], [1], [0, 0, 1, 1], [], []>} : vector<2x64xf32>, vector<64x256xf32>, vector<2x256xf32> -> vector<2x256xf32>
    %412 = arith.addf %410, %411 : vector<2x256xf32>
    %cst_147 = arith.constant 5.000000e-01 : f32
    %413 = vector.broadcast %cst_147 : f32 to vector<2x256xf32>
    %414 = arith.mulf %413, %412 : vector<2x256xf32>
    %415 = math.tanh %414 : vector<2x256xf32>
    %416 = vector.extract_strided_slice %415 {offsets = [0, 0], sizes = [2, 64], strides = [1, 1]} : vector<2x256xf32> to vector<2x64xf32>
    %cst_148 = arith.constant 5.000000e-01 : f32
    %417 = vector.broadcast %cst_148 : f32 to vector<2x64xf32>
    %418 = arith.mulf %417, %416 : vector<2x64xf32>
    %cst_149 = arith.constant 5.000000e-01 : f32
    %419 = vector.broadcast %cst_149 : f32 to vector<2x64xf32>
    %420 = arith.addf %418, %419 : vector<2x64xf32>
    %421 = vector.extract_strided_slice %415 {offsets = [0, 64], sizes = [2, 64], strides = [1, 1]} : vector<2x256xf32> to vector<2x64xf32>
    %cst_150 = arith.constant 5.000000e-01 : f32
    %422 = vector.broadcast %cst_150 : f32 to vector<2x64xf32>
    %423 = arith.mulf %422, %421 : vector<2x64xf32>
    %cst_151 = arith.constant 5.000000e-01 : f32
    %424 = vector.broadcast %cst_151 : f32 to vector<2x64xf32>
    %425 = arith.addf %423, %424 : vector<2x64xf32>
    %426 = vector.extract_strided_slice %415 {offsets = [0, 128], sizes = [2, 64], strides = [1, 1]} : vector<2x256xf32> to vector<2x64xf32>
    %427 = vector.extract_strided_slice %415 {offsets = [0, 192], sizes = [2, 64], strides = [1, 1]} : vector<2x256xf32> to vector<2x64xf32>
    %cst_152 = arith.constant 5.000000e-01 : f32
    %428 = vector.broadcast %cst_152 : f32 to vector<2x64xf32>
    %429 = arith.mulf %428, %427 : vector<2x64xf32>
    %cst_153 = arith.constant 5.000000e-01 : f32
    %430 = vector.broadcast %cst_153 : f32 to vector<2x64xf32>
    %431 = arith.addf %429, %430 : vector<2x64xf32>
    %432 = arith.mulf %425, %407 : vector<2x64xf32>
    %433 = arith.mulf %420, %426 : vector<2x64xf32>
    %434 = arith.addf %432, %433 : vector<2x64xf32>
    %435 = math.tanh %434 : vector<2x64xf32>
    %436 = arith.mulf %431, %435 : vector<2x64xf32>
    %437 = vector.extract_strided_slice %243 {offsets = [14, 0], sizes = [2, 256], strides = [1, 1]} : vector<16x256xf32> to vector<2x256xf32>
    %cst_154 = arith.constant dense<0.000000e+00> : vector<2x256xf32>
    %438 = tpu.matmul %436, %245, %cst_154 {dimension_numbers = #tpu.dot_dimension_numbers<[1], [0], [0], [1], [0, 0, 1, 1], [], []>} : vector<2x64xf32>, vector<64x256xf32>, vector<2x256xf32> -> vector<2x256xf32>
    %439 = arith.addf %437, %438 : vector<2x256xf32>
    %cst_155 = arith.constant 5.000000e-01 : f32
    %440 = vector.broadcast %cst_155 : f32 to vector<2x256xf32>
    %441 = arith.mulf %440, %439 : vector<2x256xf32>
    %442 = math.tanh %441 : vector<2x256xf32>
    %443 = vector.extract_strided_slice %442 {offsets = [0, 0], sizes = [2, 64], strides = [1, 1]} : vector<2x256xf32> to vector<2x64xf32>
    %cst_156 = arith.constant 5.000000e-01 : f32
    %444 = vector.broadcast %cst_156 : f32 to vector<2x64xf32>
    %445 = arith.mulf %444, %443 : vector<2x64xf32>
    %cst_157 = arith.constant 5.000000e-01 : f32
    %446 = vector.broadcast %cst_157 : f32 to vector<2x64xf32>
    %447 = arith.addf %445, %446 : vector<2x64xf32>
    %448 = vector.extract_strided_slice %442 {offsets = [0, 64], sizes = [2, 64], strides = [1, 1]} : vector<2x256xf32> to vector<2x64xf32>
    %cst_158 = arith.constant 5.000000e-01 : f32
    %449 = vector.broadcast %cst_158 : f32 to vector<2x64xf32>
    %450 = arith.mulf %449, %448 : vector<2x64xf32>
    %cst_159 = arith.constant 5.000000e-01 : f32
    %451 = vector.broadcast %cst_159 : f32 to vector<2x64xf32>
    %452 = arith.addf %450, %451 : vector<2x64xf32>
    %453 = vector.extract_strided_slice %442 {offsets = [0, 128], sizes = [2, 64], strides = [1, 1]} : vector<2x256xf32> to vector<2x64xf32>
    %454 = vector.extract_strided_slice %442 {offsets = [0, 192], sizes = [2, 64], strides = [1, 1]} : vector<2x256xf32> to vector<2x64xf32>
    %cst_160 = arith.constant 5.000000e-01 : f32
    %455 = vector.broadcast %cst_160 : f32 to vector<2x64xf32>
    %456 = arith.mulf %455, %454 : vector<2x64xf32>
    %cst_161 = arith.constant 5.000000e-01 : f32
    %457 = vector.broadcast %cst_161 : f32 to vector<2x64xf32>
    %458 = arith.addf %456, %457 : vector<2x64xf32>
    %459 = arith.mulf %452, %434 : vector<2x64xf32>
    %460 = arith.mulf %447, %453 : vector<2x64xf32>
    %461 = arith.addf %459, %460 : vector<2x64xf32>
    %462 = math.tanh %461 : vector<2x64xf32>
    %463 = arith.mulf %458, %462 : vector<2x64xf32>
    %c0_162 = arith.constant 0 : index
    %c0_163 = arith.constant 0 : index
    %464 = vector.load %arg4[%c0_162, %c0_163] : memref<64x28xf32, #tpu.memory_space<vmem>>, vector<64x28xf32>
    %cst_164 = arith.constant dense<0.000000e+00> : vector<2x28xf32>
    %465 = tpu.matmul %463, %464, %cst_164 {dimension_numbers = #tpu.dot_dimension_numbers<[1], [0], [0], [1], [0, 0, 1, 1], [], []>} : vector<2x64xf32>, vector<64x28xf32>, vector<2x28xf32> -> vector<2x28xf32>
    %c0_165 = arith.constant 0 : index
    %c0_166 = arith.constant 0 : index
    %466 = vector.load %arg5[%c0_165, %c0_166] : memref<1x28xf32, #tpu.memory_space<vmem>>, vector<1x28xf32>
    %467 = vector.broadcast %466 : vector<1x28xf32> to vector<2x28xf32>
    %468 = arith.addf %465, %467 : vector<2x28xf32>
    %cst_167 = arith.constant dense<0xFF800000> : vector<2xf32>
    %469 = vector.multi_reduction <maximumf>, %468, %cst_167 [1] : vector<2x28xf32> to vector<2xf32>
    %470 = vector.shape_cast %469 : vector<2xf32> to vector<2x1xf32>
    %471 = vector.broadcast %470 : vector<2x1xf32> to vector<2x28xf32>
    %472 = arith.subf %468, %471 : vector<2x28xf32>
    %473 = math.exp %472 : vector<2x28xf32>
    %cst_168 = arith.constant dense<0.000000e+00> : vector<2xf32>
    %474 = vector.multi_reduction <add>, %473, %cst_168 [1] : vector<2x28xf32> to vector<2xf32>
    %475 = vector.shape_cast %474 : vector<2xf32> to vector<2x1xf32>
    %476 = vector.broadcast %475 : vector<2x1xf32> to vector<2x28xf32>
    %477 = arith.divf %473, %476 : vector<2x28xf32>
    %c0_169 = arith.constant 0 : index
    %c0_170 = arith.constant 0 : index
    %478 = vector.load %arg6[%c0_169, %c0_170] : memref<2x28xf32, #tpu.memory_space<vmem>>, vector<2x28xf32>
    tpu.vector_store %arg6[%c0_169, %c0_170], %477 {strides = array<i32>} : memref<2x28xf32, #tpu.memory_space<vmem>>, vector<2x28xf32>,
    return
  }
}

</mosaic_0001>

<llo_original>
// kernel: deeplog_forward.1
$region0: #{deeplog_forward.1}
  #allocation0 [shape = 'u32[]', space=smem, size = 0x4, offset = 0x4, fixed_abs, tag = 'smem constant byte address 0x4 - core index']
  #allocation1 [shape = 'u32[144,128]{1,0:T(1,128)}', space=vmem, size = 0x12000, scoped, tag = 'internal scratch']
  #allocation2 [shape = 'f32[16,64]{1,0:T(8,128)}', space=vmem, size = 0x2000, scoped, tag = 'scratch operand']
  %s0 = inlined_call_operand.vmem [shape: f32[16,64], index: 0, kind: input, shape index: {}]
  %s1 = inlined_call_operand.hbm [shape: f32[2,64,256], index: 1, kind: input, shape index: {}]
  %s2 = inlined_call_operand.hbm [shape: f32[2,64,256], index: 2, kind: input, shape index: {}]
  %s3 = inlined_call_operand.vmem [shape: f32[2,1,256], index: 3, kind: input, shape index: {}]
  %s4 = inlined_call_operand.vmem [shape: f32[64,28], index: 4, kind: input, shape index: {}]
  %s5 = inlined_call_operand.vmem [shape: f32[1,28], index: 5, kind: input, shape index: {}]
  %s6 = inlined_call_operand.hbm [shape: f32[2,28], index: 6, kind: output, shape index: {}]
  %s7 = sld [smem:[#allocation0]]
  $region42: #{deeplog_forward.1} parent=0
    _
  %s9 = ssub.s32 1, %s7
  %s10 = scalar_select 0, %s9, %s7
  $region1: #{deeplog_forward.1} parent=0
    #allocation3 [shape = 'u8[131072]{0}', space=vmem, size = 0x20000, scoped, tag = 'input window, operand 1, single buffered']
    #allocation4 [shape = 's32[1]{0}', space=sflag, size = 0x4, scoped, tag = 'scoped memory for deeplog_forward.1']
    #allocation5 [shape = 's32[1]{0}', space=sflag, size = 0x4, scoped, tag = 'scoped memory for deeplog_forward.1']
    #allocation6 [shape = 'u8[131072]{0}', space=vmem, size = 0x20000, scoped, tag = 'input window, operand 2, single buffered']
    #allocation7 [shape = 's32[1]{0}', space=sflag, size = 0x4, scoped, tag = 'scoped memory for deeplog_forward.1']
    #allocation8 [shape = 'u8[1024]{0}', space=vmem, size = 0x400, scoped, tag = 'output window, operand 0, single buffered']
    %11 = vsyncpa [#allocation4], 0
    %12 = vsyncpa [#allocation7], 0
    %13 = vsyncpa [#allocation5], 0
    // Predicated region
    $region2: #{deeplog_forward.1} parent=1 // pred_check
      _
    $region3: #{deeplog_forward.1} parent=1 // pred_check_branch
      %15 = sbr.rel (0) target = $region5
    $region4: #{deeplog_forward.1} parent=1 // pred_region
      _
    $region5: #{deeplog_forward.1} parent=1 // pred_fallthru
      _
    // Predicated region
    $region6: #{deeplog_forward.1} parent=1 // pred_check
      _
    $region7: #{deeplog_forward.1} parent=1 // pred_check_branch
      %17 = sbr.rel (0) target = $region9
    $region8: #{deeplog_forward.1} parent=1 // pred_region
      %s19 = ssub.s32 4096, 4096
      %20 = vsyncadd [#allocation4], %s19
      %s21 = sshll.u32 [#allocation3], 4
      %s22 = int_to_ptr.vmem [resolvable:$true] %s21
      %27 = dma.hbm_to_vmem [thread:$0]  %s1, 4096, %s22, [#allocation4], 256, 256, 16
    $region9: #{deeplog_forward.1} parent=1 // pred_fallthru
      _
    // Predicated region
    $region10: #{deeplog_forward.1} parent=1 // pred_check
      _
    $region11: #{deeplog_forward.1} parent=1 // pred_check_branch
      %29 = sbr.rel (0) target = $region13
    $region12: #{deeplog_forward.1} parent=1 // pred_region
      %s31 = ssub.s32 4096, 4096
      %32 = vsyncadd [#allocation7], %s31
      %s33 = sshll.u32 [#allocation6], 4
      %s34 = int_to_ptr.vmem [resolvable:$true] %s33
      %39 = dma.hbm_to_vmem [thread:$0]  %s2, 4096, %s34, [#allocation7], 256, 256, 16
    $region13: #{deeplog_forward.1} parent=1 // pred_fallthru
      _
    // Predicated region
    $region14: #{deeplog_forward.1} parent=1 // pred_check
      _
    $region15: #{deeplog_forward.1} parent=1 // pred_check_branch
      %41 = sbr.rel (0) target = $region17
    $region16: #{deeplog_forward.1} parent=1 // pred_region
      _
    $region17: #{deeplog_forward.1} parent=1 // pred_fallthru
      _
    // Predicated region
    $region18: #{deeplog_forward.1} parent=1 // pred_check
      _
    $region19: #{deeplog_forward.1} parent=1 // pred_check_branch
      %43 = sbr.rel (0) target = $region21
    $region20: #{deeplog_forward.1} parent=1 // pred_region
      _
    $region21: #{deeplog_forward.1} parent=1 // pred_fallthru
      _
    // Predicated region
    $region22: #{deeplog_forward.1} parent=1 // pred_check
      _
    $region23: #{deeplog_forward.1} parent=1 // pred_check_branch
      %45 = sbr.rel (0) target = $region25
    $region24: #{deeplog_forward.1} parent=1 // pred_region
      _
    $region25: #{deeplog_forward.1} parent=1 // pred_fallthru
      _
    // Predicated region
    $region26: #{deeplog_forward.1} parent=1 // pred_check
      _
    $region27: #{deeplog_forward.1} parent=1 // pred_check_branch
      %47 = sbr.rel (0) target = $region29
    $region28: #{deeplog_forward.1} parent=1 // pred_region
      %48 = dma.done [#allocation4], 4096
    $region29: #{deeplog_forward.1} parent=1 // pred_fallthru
      _
    // Predicated region
    $region30: #{deeplog_forward.1} parent=1 // pred_check
      _
    $region31: #{deeplog_forward.1} parent=1 // pred_check_branch
      %50 = sbr.rel (0) target = $region33
    $region32: #{deeplog_forward.1} parent=1 // pred_region
      %51 = dma.done [#allocation7], 4096
    $region33: #{deeplog_forward.1} parent=1 // pred_fallthru
      _
    %v52 = vld [vmem:[%s0] sm:$0xff]
    %v53 = vld [vmem:[%s0 + $0x8] sm:$0xff]
    %v54 = vld [vmem:[#allocation3] sm:$0xff]
    %v55 = vld [vmem:[#allocation3 + $0x8] sm:$0xff]
    %v56 = vld [vmem:[#allocation3 + $0x10] sm:$0xff]
    %v57 = vld [vmem:[#allocation3 + $0x18] sm:$0xff]
    %v58 = vld [vmem:[#allocation3 + $0x20] sm:$0xff]
    %v59 = vld [vmem:[#allocation3 + $0x28] sm:$0xff]
    %v60 = vld [vmem:[#allocation3 + $0x30] sm:$0xff]
    %v61 = vld [vmem:[#allocation3 + $0x38] sm:$0xff]
    %v62 = vld [vmem:[#allocation3 + $0x40] sm:$0xff]
    %v63 = vld [vmem:[#allocation3 + $0x48] sm:$0xff]
    %v64 = vld [vmem:[#allocation3 + $0x50] sm:$0xff]
    %v65 = vld [vmem:[#allocation3 + $0x58] sm:$0xff]
    %v66 = vld [vmem:[#allocation3 + $0x60] sm:$0xff]
    %v67 = vld [vmem:[#allocation3 + $0x68] sm:$0xff]
    %v68 = vld [vmem:[#allocation3 + $0x70] sm:$0xff]
    %v69 = vld [vmem:[#allocation3 + $0x78] sm:$0xff]
    %v70 = vld [vmem:[%s3] sm:$0x3]
    %v72 = vlaneseq
    %v73 = vshrl.u32 %v72, 7
    %v74 = vsub.s32 0, %v73
    %v75 = vrot.slane %v70, %v74
    %v76 = vlaneseq
    %v77 = vshrl.u32 %v76, 7
    %v78 = vsub.s32 1, %v77
    %v79 = vrot.slane %v70, %v78
    %vm82 = vcmask 523264
    %v84 = vsel %vm82, %v52, 0
    %v87 = vsel %vm82, %v53, 0
    %89 = vmatprep.subr.mxu0 0.0
    %90 = vmatpush1.msra.mxu0 0.0
    %91 = vmatprep.subr.mxu0 0.0
    %92 = vmatpush1.msra.mxu0 0.0
    %93 = vmatprep.subr.mxu0 0.0
    %94 = vmatpush1.msra.mxu0 0.0
    %95 = vmatprep.subr.mxu0 0.0
    %96 = vmatpush1.msra.mxu0 0.0
    %97 = vmatprep.subr.mxu0 0.0
    %98 = vmatpush1.msra.mxu0 0.0
    %99 = vmatprep.subr.mxu0 0.0
    %100 = vmatpush1.msra.mxu0 0.0
    %101 = vmatprep.subr.mxu0 0.0
    %102 = vmatpush1.msra.mxu0 0.0
    %103 = vmatprep.subr.mxu0 0.0
    %104 = vmatpush1.msra.mxu0 0.0
    %105 = vmatprep.subr.mxu0 %v69
    %106 = vmatpush1.msra.mxu0 %v68
    %107 = vmatprep.subr.mxu0 %v67
    %108 = vmatpush1.msra.mxu0 %v66
    %109 = vmatprep.subr.mxu0 %v65
    %110 = vmatpush1.msra.mxu0 %v64
    %111 = vmatprep.subr.mxu0 %v63
    %112 = vmatpush1.msra.mxu0 %v62
    %113 = vmatprep.subr.mxu0 %v61
    %114 = vmatpush1.msra.mxu0 %v60
    %115 = vmatprep.subr.mxu0 %v59
    %116 = vmatpush1.msra.mxu0 %v58
    %117 = vmatprep.subr.mxu0 %v57
    %118 = vmatpush1.msra.mxu0 %v56
    %119 = vmatprep.subr.mxu0 %v55
    %120 = vmatpush1.msra.mxu0 %v54
    %121 = vmatprep.subr.mxu0 0.0
    %122 = vmatpush2.msra.mxu0 0.0
    %123 = vmatprep.subr.mxu0 0.0
    %124 = vmatpush2.msra.mxu0 0.0
    %125 = vmatprep.subr.mxu0 0.0
    %126 = vmatpush2.msra.mxu0 0.0
    %127 = vmatprep.subr.mxu0 0.0
    %128 = vmatpush2.msra.mxu0 0.0
    %129 = vmatprep.subr.mxu0 0.0
    %130 = vmatpush2.msra.mxu0 0.0
    %131 = vmatprep.subr.mxu0 0.0
    %132 = vmatpush2.msra.mxu0 0.0
    %133 = vmatprep.subr.mxu0 0.0
    %134 = vmatpush2.msra.mxu0 0.0
    %135 = vmatprep.subr.mxu0 0.0
    %136 = vmatpush2.msra.mxu0 0.0
    %137 = vmatprep.subr.mxu0 0.0
    %138 = vmatpush2.msra.mxu0 0.0
    %139 = vmatprep.subr.mxu0 0.0
    %140 = vmatpush2.msra.mxu0 0.0
    %141 = vmatprep.subr.mxu0 0.0
    %142 = vmatpush2.msra.mxu0 0.0
    %143 = vmatprep.subr.mxu0 0.0
    %144 = vmatpush2.msra.mxu0 0.0
    %145 = vmatprep.subr.mxu0 0.0
    %146 = vmatpush2.msra.mxu0 0.0
    %147 = vmatprep.subr.mxu0 0.0
    %148 = vmatpush2.msra.mxu0 0.0
    %149 = vmatprep.subr.mxu0 0.0
    %150 = vmatpush2.msra.mxu0 0.0
    %151 = vmatprep.subr.mxu0 0.0
    %152 = vmatpush2.msra.mxu0 0.0
    %153 = vmatprep.mubr.f32.mxu0 0.0
    %154 = vmatmul.mubr.f32.gmra.mxu0 %v84
    %v155 = vpop.f32.mrf.mxu0
    %v156 = vadd.f32 %v75, %v155
    %v157 = vpop.f32.mrf.mxu0
    %v158 = vadd.f32 %v79, %v157
    %159 = vmatprep.mubr.f32.mxu0 0.0
    %160 = vmatmul.mubr.f32.gmra.mxu0 %v87
    %v161 = vpop.f32.mrf.mxu0
    %v162 = vadd.f32 %v75, %v161
    %v163 = vpop.f32.mrf.mxu0
    %v164 = vadd.f32 %v79, %v163
    %165 = vdwg.mxu0
    %v166 = vld [vmem:[#allocation6] sm:$0xff]
    %v167 = vld [vmem:[#allocation6 + $0x8] sm:$0xff]
    %v168 = vld [vmem:[#allocation6 + $0x10] sm:$0xff]
    %v169 = vld [vmem:[#allocation6 + $0x18] sm:$0xff]
    %v170 = vld [vmem:[#allocation6 + $0x20] sm:$0xff]
    %v171 = vld [vmem:[#allocation6 + $0x28] sm:$0xff]
    %v172 = vld [vmem:[#allocation6 + $0x30] sm:$0xff]
    %v173 = vld [vmem:[#allocation6 + $0x38] sm:$0xff]
    %v174 = vld [vmem:[#allocation6 + $0x40] sm:$0xff]
    %v175 = vld [vmem:[#allocation6 + $0x48] sm:$0xff]
    %v176 = vld [vmem:[#allocation6 + $0x50] sm:$0xff]
    %v177 = vld [vmem:[#allocation6 + $0x58] sm:$0xff]
    %v178 = vld [vmem:[#allocation6 + $0x60] sm:$0xff]
    %v179 = vld [vmem:[#allocation6 + $0x68] sm:$0xff]
    %v180 = vld [vmem:[#allocation6 + $0x70] sm:$0xff]
    %v181 = vld [vmem:[#allocation6 + $0x78] sm:$0xff]
    %v183 = vsel %vm82, 0.0, 0
    %185 = vmatprep.subr.mxu0 0.0
    %186 = vmatpush1.msra.mxu0 0.0
    %187 = vmatprep.subr.mxu0 0.0
    %188 = vmatpush1.msra.mxu0 0.0
    %189 = vmatprep.subr.mxu0 0.0
    %190 = vmatpush1.msra.mxu0 0.0
    %191 = vmatprep.subr.mxu0 0.0
    %192 = vmatpush1.msra.mxu0 0.0
    %193 = vmatprep.subr.mxu0 0.0
    %194 = vmatpush1.msra.mxu0 0.0
    %195 = vmatprep.subr.mxu0 0.0
    %196 = vmatpush1.msra.mxu0 0.0
    %197 = vmatprep.subr.mxu0 0.0
    %198 = vmatpush1.msra.mxu0 0.0
    %199 = vmatprep.subr.mxu0 0.0
    %200 = vmatpush1.msra.mxu0 0.0
    %201 = vmatprep.subr.mxu0 %v181
    %202 = vmatpush1.msra.mxu0 %v180
    %203 = vmatprep.subr.mxu0 %v179
    %204 = vmatpush1.msra.mxu0 %v178
    %205 = vmatprep.subr.mxu0 %v177
    %206 = vmatpush1.msra.mxu0 %v176
    %207 = vmatprep.subr.mxu0 %v175
    %208 = vmatpush1.msra.mxu0 %v174
    %209 = vmatprep.subr.mxu0 %v173
    %210 = vmatpush1.msra.mxu0 %v172
    %211 = vmatprep.subr.mxu0 %v171
    %212 = vmatpush1.msra.mxu0 %v170
    %213 = vmatprep.subr.mxu0 %v169
    %214 = vmatpush1.msra.mxu0 %v168
    %215 = vmatprep.subr.mxu0 %v167
    %216 = vmatpush1.msra.mxu0 %v166
    %217 = vmatprep.subr.mxu0 0.0
    %218 = vmatpush2.msra.mxu0 0.0
    %219 = vmatprep.subr.mxu0 0.0
    %220 = vmatpush2.msra.mxu0 0.0
    %221 = vmatprep.subr.mxu0 0.0
    %222 = vmatpush2.msra.mxu0 0.0
    %223 = vmatprep.subr.mxu0 0.0
    %224 = vmatpush2.msra.mxu0 0.0
    %225 = vmatprep.subr.mxu0 0.0
    %226 = vmatpush2.msra.mxu0 0.0
    %227 = vmatprep.subr.mxu0 0.0
    %228 = vmatpush2.msra.mxu0 0.0
    %229 = vmatprep.subr.mxu0 0.0
    %230 = vmatpush2.msra.mxu0 0.0
    %231 = vmatprep.subr.mxu0 0.0
    %232 = vmatpush2.msra.mxu0 0.0
    %233 = vmatprep.subr.mxu0 0.0
    %234 = vmatpush2.msra.mxu0 0.0
    %235 = vmatprep.subr.mxu0 0.0
    %236 = vmatpush2.msra.mxu0 0.0
    %237 = vmatprep.subr.mxu0 0.0
    %238 = vmatpush2.msra.mxu0 0.0
    %239 = vmatprep.subr.mxu0 0.0
    %240 = vmatpush2.msra.mxu0 0.0
    %241 = vmatprep.subr.mxu0 0.0
    %242 = vmatpush2.msra.mxu0 0.0
    %243 = vmatprep.subr.mxu0 0.0
    %244 = vmatpush2.msra.mxu0 0.0
    %245 = vmatprep.subr.mxu0 0.0
    %246 = vmatpush2.msra.mxu0 0.0
    %247 = vmatprep.subr.mxu0 0.0
    %248 = vmatpush2.msra.mxu0 0.0
    %249 = vmatprep.mubr.f32.mxu0 0.0
    %250 = vmatmul.mubr.f32.gmra.mxu0 %v183
    %v251 = vpop.f32.mrf.mxu0
    %v252 = vadd.f32 0.0, %v251
    %v253 = vpop.f32.mrf.mxu0
    %v254 = vadd.f32 0.0, %v253
    %255 = vdwg.mxu0
    %v256 = vadd.f32 %v156, %v252
    %v257 = vadd.f32 %v158, %v254
    %v258 = vmul.f32 %v256, 0.5
    %v259 = vmul.f32 %v257, 0.5
    %v260 = vtanh.pop %v258
    %v261 = vtanh.pop %v259
    %v262 = vmul.f32 %v260, 0.5
    %v263 = vadd.f32 %v262, 0.5
    %v264 = vmul.f32 %v261, 0.5
    %v265 = vadd.f32 %v264, 0.5
    %v266 = vmul.f32 %v263, 0.0
    %v267 = vmul.f32 %v263, %v261
    %269 = vrot.lane.b32.xlu0 %v267, 64
    %v270 = vpop.permute.xlu0 %269
    %v272 = vadd.f32 %v266, %v270
    %v273 = vtanh.pop %v272
    %v274 = vmul.f32 %v265, %v273
    %276 = vrot.lane.b32.xlu0 %v274, 64
    %v277 = vpop.permute.xlu0 %276
    %vm279 = vcmask 517120
    %280 = vst.msk [vmem:[#allocation2] sm:$0x3] %vm279, %v277
    %v281 = vsel %vm82, %v277, 0
    %283 = vmatprep.subr.mxu0 0.0
    %284 = vmatpush1.msra.mxu0 0.0
    %285 = vmatprep.subr.mxu0 0.0
    %286 = vmatpush1.msra.mxu0 0.0
    %287 = vmatprep.subr.mxu0 0.0
    %288 = vmatpush1.msra.mxu0 0.0
    %289 = vmatprep.subr.mxu0 0.0
    %290 = vmatpush1.msra.mxu0 0.0
    %291 = vmatprep.subr.mxu0 0.0
    %292 = vmatpush1.msra.mxu0 0.0
    %293 = vmatprep.subr.mxu0 0.0
    %294 = vmatpush1.msra.mxu0 0.0
    %295 = vmatprep.subr.mxu0 0.0
    %296 = vmatpush1.msra.mxu0 0.0
    %297 = vmatprep.subr.mxu0 0.0
    %298 = vmatpush1.msra.mxu0 0.0
    %299 = vmatprep.subr.mxu0 %v181
    %300 = vmatpush1.msra.mxu0 %v180
    %301 = vmatprep.subr.mxu0 %v179
    %302 = vmatpush1.msra.mxu0 %v178
    %303 = vmatprep.subr.mxu0 %v177
    %304 = vmatpush1.msra.mxu0 %v176
    %305 = vmatprep.subr.mxu0 %v175
    %306 = vmatpush1.msra.mxu0 %v174
    %307 = vmatprep.subr.mxu0 %v173
    %308 = vmatpush1.msra.mxu0 %v172
    %309 = vmatprep.subr.mxu0 %v171
    %310 = vmatpush1.msra.mxu0 %v170
    %311 = vmatprep.subr.mxu0 %v169
    %312 = vmatpush1.msra.mxu0 %v168
    %313 = vmatprep.subr.mxu0 %v167
    %314 = vmatpush1.msra.mxu0 %v166
    %315 = vmatprep.subr.mxu0 0.0
    %316 = vmatpush2.msra.mxu0 0.0
    %317 = vmatprep.subr.mxu0 0.0
    %318 = vmatpush2.msra.mxu0 0.0
    %319 = vmatprep.subr.mxu0 0.0
    %320 = vmatpush2.msra.mxu0 0.0
    %321 = vmatprep.subr.mxu0 0.0
    %322 = vmatpush2.msra.mxu0 0.0
    %323 = vmatprep.subr.mxu0 0.0
    %324 = vmatpush2.msra.mxu0 0.0
    %325 = vmatprep.subr.mxu0 0.0
    %326 = vmatpush2.msra.mxu0 0.0
    %327 = vmatprep.subr.mxu0 0.0
    %328 = vmatpush2.msra.mxu0 0.0
    %329 = vmatprep.subr.mxu0 0.0
    %330 = vmatpush2.msra.mxu0 0.0
    %331 = vmatprep.subr.mxu0 0.0
    %332 = vmatpush2.msra.mxu0 0.0
    %333 = vmatprep.subr.mxu0 0.0
    %334 = vmatpush2.msra.mxu0 0.0
    %335 = vmatprep.subr.mxu0 0.0
    %336 = vmatpush2.msra.mxu0 0.0
    %337 = vmatprep.subr.mxu0 0.0
    %338 = vmatpush2.msra.mxu0 0.0
    %339 = vmatprep.subr.mxu0 0.0
    %340 = vmatpush2.msra.mxu0 0.0
    %341 = vmatprep.subr.mxu0 0.0
    %342 = vmatpush2.msra.mxu0 0.0
    %343 = vmatprep.subr.mxu0 0.0
    %344 = vmatpush2.msra.mxu0 0.0
    %345 = vmatprep.subr.mxu0 0.0
    %346 = vmatpush2.msra.mxu0 0.0
    %347 = vmatprep.mubr.f32.mxu0 0.0
    %348 = vmatmul.mubr.f32.gmra.mxu0 %v281
    %v349 = vpop.f32.mrf.mxu0
    %v350 = vadd.f32 0.0, %v349
    %v351 = vpop.f32.mrf.mxu0
    %v352 = vadd.f32 0.0, %v351
    %353 = vdwg.mxu0
    %v356 = vrot.slane %v350, 6
    %v357 = vrot.slane %v352, 6
    %v360 = vadd.f32 %v156, %v356
    %v361 = vadd.f32 %v158, %v357
    %v362 = vmul.f32 %v360, 0.5
    %v363 = vmul.f32 %v361, 0.5
    %v364 = vtanh.pop %v362
    %v365 = vtanh.pop %v363
    %v366 = vmul.f32 %v364, 0.5
    %v367 = vadd.f32 %v366, 0.5
    %v368 = vmul.f32 %v365, 0.5
    %v369 = vadd.f32 %v368, 0.5
    %v371 = vrot.slane %v272, 6
    %v373 = vmul.f32 %v367, %v371
    %v374 = vmul.f32 %v367, %v365
    %376 = vrot.lane.b32.xlu0 %v374, 64
    %v377 = vpop.permute.xlu0 %376
    %v379 = vadd.f32 %v373, %v377
    %v380 = vtanh.pop %v379
    %v381 = vmul.f32 %v369, %v380
    %383 = vrot.lane.b32.xlu0 %v381, 64
    %v384 = vpop.permute.xlu0 %383
    %vm386 = vcmask 519170
    %387 = vst.msk [vmem:[#allocation2] sm:$0xc] %vm386, %v384
    %v388 = vrot.slane %v381, 2
    %389 = vrot.lane.b32.xlu0 %v388, 64
    %v390 = vpop.permute.xlu0 %389
    %v391 = vsel %vm82, %v390, 0
    %393 = vmatprep.subr.mxu0 0.0
    %394 = vmatpush1.msra.mxu0 0.0
    %395 = vmatprep.subr.mxu0 0.0
    %396 = vmatpush1.msra.mxu0 0.0
    %397 = vmatprep.subr.mxu0 0.0
    %398 = vmatpush1.msra.mxu0 0.0
    %399 = vmatprep.subr.mxu0 0.0
    %400 = vmatpush1.msra.mxu0 0.0
    %401 = vmatprep.subr.mxu0 0.0
    %402 = vmatpush1.msra.mxu0 0.0
    %403 = vmatprep.subr.mxu0 0.0
    %404 = vmatpush1.msra.mxu0 0.0
    %405 = vmatprep.subr.mxu0 0.0
    %406 = vmatpush1.msra.mxu0 0.0
    %407 = vmatprep.subr.mxu0 0.0
    %408 = vmatpush1.msra.mxu0 0.0
    %409 = vmatprep.subr.mxu0 %v181
    %410 = vmatpush1.msra.mxu0 %v180
    %411 = vmatprep.subr.mxu0 %v179
    %412 = vmatpush1.msra.mxu0 %v178
    %413 = vmatprep.subr.mxu0 %v177
    %414 = vmatpush1.msra.mxu0 %v176
    %415 = vmatprep.subr.mxu0 %v175
    %416 = vmatpush1.msra.mxu0 %v174
    %417 = vmatprep.subr.mxu0 %v173
    %418 = vmatpush1.msra.mxu0 %v172
    %419 = vmatprep.subr.mxu0 %v171
    %420 = vmatpush1.msra.mxu0 %v170
    %421 = vmatprep.subr.mxu0 %v169
    %422 = vmatpush1.msra.mxu0 %v168
    %423 = vmatprep.subr.mxu0 %v167
    %424 = vmatpush1.msra.mxu0 %v166
    %425 = vmatprep.subr.mxu0 0.0
    %426 = vmatpush2.msra.mxu0 0.0
    %427 = vmatprep.subr.mxu0 0.0
    %428 = vmatpush2.msra.mxu0 0.0
    %429 = vmatprep.subr.mxu0 0.0
    %430 = vmatpush2.msra.mxu0 0.0
    %431 = vmatprep.subr.mxu0 0.0
    %432 = vmatpush2.msra.mxu0 0.0
    %433 = vmatprep.subr.mxu0 0.0
    %434 = vmatpush2.msra.mxu0 0.0
    %435 = vmatprep.subr.mxu0 0.0
    %436 = vmatpush2.msra.mxu0 0.0
    %437 = vmatprep.subr.mxu0 0.0
    %438 = vmatpush2.msra.mxu0 0.0
    %439 = vmatprep.subr.mxu0 0.0
    %440 = vmatpush2.msra.mxu0 0.0
    %441 = vmatprep.subr.mxu0 0.0
    %442 = vmatpush2.msra.mxu0 0.0
    %443 = vmatprep.subr.mxu0 0.0
    %444 = vmatpush2.msra.mxu0 0.0
    %445 = vmatprep.subr.mxu0 0.0
    %446 = vmatpush2.msra.mxu0 0.0
    %447 = vmatprep.subr.mxu0 0.0
    %448 = vmatpush2.msra.mxu0 0.0
    %449 = vmatprep.subr.mxu0 0.0
    %450 = vmatpush2.msra.mxu0 0.0
    %451 = vmatprep.subr.mxu0 0.0
    %452 = vmatpush2.msra.mxu0 0.0
    %453 = vmatprep.subr.mxu0 0.0
    %454 = vmatpush2.msra.mxu0 0.0
    %455 = vmatprep.subr.mxu0 0.0
    %456 = vmatpush2.msra.mxu0 0.0
    %457 = vmatprep.mubr.f32.mxu0 0.0
    %458 = vmatmul.mubr.f32.gmra.mxu0 %v391
    %v459 = vpop.f32.mrf.mxu0
    %v460 = vadd.f32 0.0, %v459
    %v461 = vpop.f32.mrf.mxu0
    %v462 = vadd.f32 0.0, %v461
    %463 = vdwg.mxu0
    %v466 = vrot.slane %v460, 4
    %v467 = vrot.slane %v462, 4
    %v470 = vadd.f32 %v156, %v466
    %v471 = vadd.f32 %v158, %v467
    %v472 = vmul.f32 %v470, 0.5
    %v473 = vmul.f32 %v471, 0.5
    %v474 = vtanh.pop %v472
    %v475 = vtanh.pop %v473
    %v476 = vmul.f32 %v474, 0.5
    %v477 = vadd.f32 %v476, 0.5
    %v478 = vmul.f32 %v475, 0.5
    %v479 = vadd.f32 %v478, 0.5
    %v481 = vrot.slane %v379, 6
    %v483 = vmul.f32 %v477, %v481
    %v484 = vmul.f32 %v477, %v475
    %486 = vrot.lane.b32.xlu0 %v484, 64
    %v487 = vpop.permute.xlu0 %486
    %v489 = vadd.f32 %v483, %v487
    %v490 = vtanh.pop %v489
    %v491 = vmul.f32 %v479, %v490
    %493 = vrot.lane.b32.xlu0 %v491, 64
    %v494 = vpop.permute.xlu0 %493
    %vm496 = vcmask 521220
    %497 = vst.msk [vmem:[#allocation2] sm:$0x30] %vm496, %v494
    %v498 = vrot.slane %v491, 4
    %499 = vrot.lane.b32.xlu0 %v498, 64
    %v500 = vpop.permute.xlu0 %499
    %v501 = vsel %vm82, %v500, 0
    %503 = vmatprep.subr.mxu0 0.0
    %504 = vmatpush1.msra.mxu0 0.0
    %505 = vmatprep.subr.mxu0 0.0
    %506 = vmatpush1.msra.mxu0 0.0
    %507 = vmatprep.subr.mxu0 0.0
    %508 = vmatpush1.msra.mxu0 0.0
    %509 = vmatprep.subr.mxu0 0.0
    %510 = vmatpush1.msra.mxu0 0.0
    %511 = vmatprep.subr.mxu0 0.0
    %512 = vmatpush1.msra.mxu0 0.0
    %513 = vmatprep.subr.mxu0 0.0
    %514 = vmatpush1.msra.mxu0 0.0
    %515 = vmatprep.subr.mxu0 0.0
    %516 = vmatpush1.msra.mxu0 0.0
    %517 = vmatprep.subr.mxu0 0.0
    %518 = vmatpush1.msra.mxu0 0.0
    %519 = vmatprep.subr.mxu0 %v181
    %520 = vmatpush1.msra.mxu0 %v180
    %521 = vmatprep.subr.mxu0 %v179
    %522 = vmatpush1.msra.mxu0 %v178
    %523 = vmatprep.subr.mxu0 %v177
    %524 = vmatpush1.msra.mxu0 %v176
    %525 = vmatprep.subr.mxu0 %v175
    %526 = vmatpush1.msra.mxu0 %v174
    %527 = vmatprep.subr.mxu0 %v173
    %528 = vmatpush1.msra.mxu0 %v172
    %529 = vmatprep.subr.mxu0 %v171
    %530 = vmatpush1.msra.mxu0 %v170
    %531 = vmatprep.subr.mxu0 %v169
    %532 = vmatpush1.msra.mxu0 %v168
    %533 = vmatprep.subr.mxu0 %v167
    %534 = vmatpush1.msra.mxu0 %v166
    %535 = vmatprep.subr.mxu0 0.0
    %536 = vmatpush2.msra.mxu0 0.0
    %537 = vmatprep.subr.mxu0 0.0
    %538 = vmatpush2.msra.mxu0 0.0
    %539 = vmatprep.subr.mxu0 0.0
    %540 = vmatpush2.msra.mxu0 0.0
    %541 = vmatprep.subr.mxu0 0.0
    %542 = vmatpush2.msra.mxu0 0.0
    %543 = vmatprep.subr.mxu0 0.0
    %544 = vmatpush2.msra.mxu0 0.0
    %545 = vmatprep.subr.mxu0 0.0
    %546 = vmatpush2.msra.mxu0 0.0
    %547 = vmatprep.subr.mxu0 0.0
    %548 = vmatpush2.msra.mxu0 0.0
    %549 = vmatprep.subr.mxu0 0.0
    %550 = vmatpush2.msra.mxu0 0.0
    %551 = vmatprep.subr.mxu0 0.0
    %552 = vmatpush2.msra.mxu0 0.0
    %553 = vmatprep.subr.mxu0 0.0
    %554 = vmatpush2.msra.mxu0 0.0
    %555 = vmatprep.subr.mxu0 0.0
    %556 = vmatpush2.msra.mxu0 0.0
    %557 = vmatprep.subr.mxu0 0.0
    %558 = vmatpush2.msra.mxu0 0.0
    %559 = vmatprep.subr.mxu0 0.0
    %560 = vmatpush2.msra.mxu0 0.0
    %561 = vmatprep.subr.mxu0 0.0
    %562 = vmatpush2.msra.mxu0 0.0
    %563 = vmatprep.subr.mxu0 0.0
    %564 = vmatpush2.msra.mxu0 0.0
    %565 = vmatprep.subr.mxu0 0.0
    %566 = vmatpush2.msra.mxu0 0.0
    %567 = vmatprep.mubr.f32.mxu0 0.0
    %568 = vmatmul.mubr.f32.gmra.mxu0 %v501
    %v569 = vpop.f32.mrf.mxu0
    %v570 = vadd.f32 0.0, %v569
    %v571 = vpop.f32.mrf.mxu0
    %v572 = vadd.f32 0.0, %v571
    %573 = vdwg.mxu0
    %v576 = vrot.slane %v570, 2
    %v577 = vrot.slane %v572, 2
    %v580 = vadd.f32 %v156, %v576
    %v581 = vadd.f32 %v158, %v577
    %v582 = vmul.f32 %v580, 0.5
    %v583 = vmul.f32 %v581, 0.5
    %v584 = vtanh.pop %v582
    %v585 = vtanh.pop %v583
    %v586 = vmul.f32 %v584, 0.5
    %v587 = vadd.f32 %v586, 0.5
    %v588 = vmul.f32 %v585, 0.5
    %v589 = vadd.f32 %v588, 0.5
    %v591 = vrot.slane %v489, 6
    %v593 = vmul.f32 %v587, %v591
    %v594 = vmul.f32 %v587, %v585
    %596 = vrot.lane.b32.xlu0 %v594, 64
    %v597 = vpop.permute.xlu0 %596
    %v599 = vadd.f32 %v593, %v597
    %v600 = vtanh.pop %v599
    %v601 = vmul.f32 %v589, %v600
    %603 = vrot.lane.b32.xlu0 %v601, 64
    %v604 = vpop.permute.xlu0 %603
    %vm606 = vcmask 523270
    %607 = vst.msk [vmem:[#allocation2] sm:$0xc0] %vm606, %v604
    %v608 = vrot.slane %v601, 6
    %609 = vrot.lane.b32.xlu0 %v608, 64
    %v610 = vpop.permute.xlu0 %609
    %v611 = vsel %vm82, %v610, 0
    %613 = vmatprep.subr.mxu0 0.0
    %614 = vmatpush1.msra.mxu0 0.0
    %615 = vmatprep.subr.mxu0 0.0
    %616 = vmatpush1.msra.mxu0 0.0
    %617 = vmatprep.subr.mxu0 0.0
    %618 = vmatpush1.msra.mxu0 0.0
    %619 = vmatprep.subr.mxu0 0.0
    %620 = vmatpush1.msra.mxu0 0.0
    %621 = vmatprep.subr.mxu0 0.0
    %622 = vmatpush1.msra.mxu0 0.0
    %623 = vmatprep.subr.mxu0 0.0
    %624 = vmatpush1.msra.mxu0 0.0
    %625 = vmatprep.subr.mxu0 0.0
    %626 = vmatpush1.msra.mxu0 0.0
    %627 = vmatprep.subr.mxu0 0.0
    %628 = vmatpush1.msra.mxu0 0.0
    %629 = vmatprep.subr.mxu0 %v181
    %630 = vmatpush1.msra.mxu0 %v180
    %631 = vmatprep.subr.mxu0 %v179
    %632 = vmatpush1.msra.mxu0 %v178
    %633 = vmatprep.subr.mxu0 %v177
    %634 = vmatpush1.msra.mxu0 %v176
    %635 = vmatprep.subr.mxu0 %v175
    %636 = vmatpush1.msra.mxu0 %v174
    %637 = vmatprep.subr.mxu0 %v173
    %638 = vmatpush1.msra.mxu0 %v172
    %639 = vmatprep.subr.mxu0 %v171
    %640 = vmatpush1.msra.mxu0 %v170
    %641 = vmatprep.subr.mxu0 %v169
    %642 = vmatpush1.msra.mxu0 %v168
    %643 = vmatprep.subr.mxu0 %v167
    %644 = vmatpush1.msra.mxu0 %v166
    %645 = vmatprep.subr.mxu0 0.0
    %646 = vmatpush2.msra.mxu0 0.0
    %647 = vmatprep.subr.mxu0 0.0
    %648 = vmatpush2.msra.mxu0 0.0
    %649 = vmatprep.subr.mxu0 0.0
    %650 = vmatpush2.msra.mxu0 0.0
    %651 = vmatprep.subr.mxu0 0.0
    %652 = vmatpush2.msra.mxu0 0.0
    %653 = vmatprep.subr.mxu0 0.0
    %654 = vmatpush2.msra.mxu0 0.0
    %655 = vmatprep.subr.mxu0 0.0
    %656 = vmatpush2.msra.mxu0 0.0
    %657 = vmatprep.subr.mxu0 0.0
    %658 = vmatpush2.msra.mxu0 0.0
    %659 = vmatprep.subr.mxu0 0.0
    %660 = vmatpush2.msra.mxu0 0.0
    %661 = vmatprep.subr.mxu0 0.0
    %662 = vmatpush2.msra.mxu0 0.0
    %663 = vmatprep.subr.mxu0 0.0
    %664 = vmatpush2.msra.mxu0 0.0
    %665 = vmatprep.subr.mxu0 0.0
    %666 = vmatpush2.msra.mxu0 0.0
    %667 = vmatprep.subr.mxu0 0.0
    %668 = vmatpush2.msra.mxu0 0.0
    %669 = vmatprep.subr.mxu0 0.0
    %670 = vmatpush2.msra.mxu0 0.0
    %671 = vmatprep.subr.mxu0 0.0
    %672 = vmatpush2.msra.mxu0 0.0
    %673 = vmatprep.subr.mxu0 0.0
    %674 = vmatpush2.msra.mxu0 0.0
    %675 = vmatprep.subr.mxu0 0.0
    %676 = vmatpush2.msra.mxu0 0.0
    %677 = vmatprep.mubr.f32.mxu0 0.0
    %678 = vmatmul.mubr.f32.gmra.mxu0 %v611
    %v679 = vpop.f32.mrf.mxu0
    %v680 = vadd.f32 0.0, %v679
    %v681 = vpop.f32.mrf.mxu0
    %v682 = vadd.f32 0.0, %v681
    %683 = vdwg.mxu0
    %v684 = vadd.f32 %v162, %v680
    %v685 = vadd.f32 %v164, %v682
    %v686 = vmul.f32 %v684, 0.5
    %v687 = vmul.f32 %v685, 0.5
    %v688 = vtanh.pop %v686
    %v689 = vtanh.pop %v687
    %v690 = vmul.f32 %v688, 0.5
    %v691 = vadd.f32 %v690, 0.5
    %v692 = vmul.f32 %v689, 0.5
    %v693 = vadd.f32 %v692, 0.5
    %v695 = vrot.slane %v599, 6
    %v697 = vmul.f32 %v691, %v695
    %v698 = vmul.f32 %v691, %v689
    %700 = vrot.lane.b32.xlu0 %v698, 64
    %v701 = vpop.permute.xlu0 %700
    %v703 = vadd.f32 %v697, %v701
    %v704 = vtanh.pop %v703
    %v705 = vmul.f32 %v693, %v704
    %707 = vrot.lane.b32.xlu0 %v705, 64
    %v708 = vpop.permute.xlu0 %707
    %710 = vst.msk [vmem:[#allocation2 + $0x8] sm:$0x3] %vm279, %v708
    %v711 = vsel %vm82, %v708, 0
    %713 = vmatprep.subr.mxu0 0.0
    %714 = vmatpush1.msra.mxu0 0.0
    %715 = vmatprep.subr.mxu0 0.0
    %716 = vmatpush1.msra.mxu0 0.0
    %717 = vmatprep.subr.mxu0 0.0
    %718 = vmatpush1.msra.mxu0 0.0
    %719 = vmatprep.subr.mxu0 0.0
    %720 = vmatpush1.msra.mxu0 0.0
    %721 = vmatprep.subr.mxu0 0.0
    %722 = vmatpush1.msra.mxu0 0.0
    %723 = vmatprep.subr.mxu0 0.0
    %724 = vmatpush1.msra.mxu0 0.0
    %725 = vmatprep.subr.mxu0 0.0
    %726 = vmatpush1.msra.mxu0 0.0
    %727 = vmatprep.subr.mxu0 0.0
    %728 = vmatpush1.msra.mxu0 0.0
    %729 = vmatprep.subr.mxu0 %v181
    %730 = vmatpush1.msra.mxu0 %v180
    %731 = vmatprep.subr.mxu0 %v179
    %732 = vmatpush1.msra.mxu0 %v178
    %733 = vmatprep.subr.mxu0 %v177
    %734 = vmatpush1.msra.mxu0 %v176
    %735 = vmatprep.subr.mxu0 %v175
    %736 = vmatpush1.msra.mxu0 %v174
    %737 = vmatprep.subr.mxu0 %v173
    %738 = vmatpush1.msra.mxu0 %v172
    %739 = vmatprep.subr.mxu0 %v171
    %740 = vmatpush1.msra.mxu0 %v170
    %741 = vmatprep.subr.mxu0 %v169
    %742 = vmatpush1.msra.mxu0 %v168
    %743 = vmatprep.subr.mxu0 %v167
    %744 = vmatpush1.msra.mxu0 %v166
    %745 = vmatprep.subr.mxu0 0.0
    %746 = vmatpush2.msra.mxu0 0.0
    %747 = vmatprep.subr.mxu0 0.0
    %748 = vmatpush2.msra.mxu0 0.0
    %749 = vmatprep.subr.mxu0 0.0
    %750 = vmatpush2.msra.mxu0 0.0
    %751 = vmatprep.subr.mxu0 0.0
    %752 = vmatpush2.msra.mxu0 0.0
    %753 = vmatprep.subr.mxu0 0.0
    %754 = vmatpush2.msra.mxu0 0.0
    %755 = vmatprep.subr.mxu0 0.0
    %756 = vmatpush2.msra.mxu0 0.0
    %757 = vmatprep.subr.mxu0 0.0
    %758 = vmatpush2.msra.mxu0 0.0
    %759 = vmatprep.subr.mxu0 0.0
    %760 = vmatpush2.msra.mxu0 0.0
    %761 = vmatprep.subr.mxu0 0.0
    %762 = vmatpush2.msra.mxu0 0.0
    %763 = vmatprep.subr.mxu0 0.0
    %764 = vmatpush2.msra.mxu0 0.0
    %765 = vmatprep.subr.mxu0 0.0
    %766 = vmatpush2.msra.mxu0 0.0
    %767 = vmatprep.subr.mxu0 0.0
    %768 = vmatpush2.msra.mxu0 0.0
    %769 = vmatprep.subr.mxu0 0.0
    %770 = vmatpush2.msra.mxu0 0.0
    %771 = vmatprep.subr.mxu0 0.0
    %772 = vmatpush2.msra.mxu0 0.0
    %773 = vmatprep.subr.mxu0 0.0
    %774 = vmatpush2.msra.mxu0 0.0
    %775 = vmatprep.subr.mxu0 0.0
    %776 = vmatpush2.msra.mxu0 0.0
    %777 = vmatprep.mubr.f32.mxu0 0.0
    %778 = vmatmul.mubr.f32.gmra.mxu0 %v711
    %v779 = vpop.f32.mrf.mxu0
    %v780 = vadd.f32 0.0, %v779
    %v781 = vpop.f32.mrf.mxu0
    %v782 = vadd.f32 0.0, %v781
    %783 = vdwg.mxu0
    %v786 = vrot.slane %v780, 6
    %v787 = vrot.slane %v782, 6
    %v790 = vadd.f32 %v162, %v786
    %v791 = vadd.f32 %v164, %v787
    %v792 = vmul.f32 %v790, 0.5
    %v793 = vmul.f32 %v791, 0.5
    %v794 = vtanh.pop %v792
    %v795 = vtanh.pop %v793
    %v796 = vmul.f32 %v794, 0.5
    %v797 = vadd.f32 %v796, 0.5
    %v798 = vmul.f32 %v795, 0.5
    %v799 = vadd.f32 %v798, 0.5
    %v801 = vrot.slane %v703, 6
    %v803 = vmul.f32 %v797, %v801
    %v804 = vmul.f32 %v797, %v795
    %806 = vrot.lane.b32.xlu0 %v804, 64
    %v807 = vpop.permute.xlu0 %806
    %v809 = vadd.f32 %v803, %v807
    %v810 = vtanh.pop %v809
    %v811 = vmul.f32 %v799, %v810
    %813 = vrot.lane.b32.xlu0 %v811, 64
    %v814 = vpop.permute.xlu0 %813
    %816 = vst.msk [vmem:[#allocation2 + $0x8] sm:$0xc] %vm386, %v814
    %v817 = vrot.slane %v811, 2
    %818 = vrot.lane.b32.xlu0 %v817, 64
    %v819 = vpop.permute.xlu0 %818
    %v820 = vsel %vm82, %v819, 0
    %822 = vmatprep.subr.mxu0 0.0
    %823 = vmatpush1.msra.mxu0 0.0
    %824 = vmatprep.subr.mxu0 0.0
    %825 = vmatpush1.msra.mxu0 0.0
    %826 = vmatprep.subr.mxu0 0.0
    %827 = vmatpush1.msra.mxu0 0.0
    %828 = vmatprep.subr.mxu0 0.0
    %829 = vmatpush1.msra.mxu0 0.0
    %830 = vmatprep.subr.mxu0 0.0
    %831 = vmatpush1.msra.mxu0 0.0
    %832 = vmatprep.subr.mxu0 0.0
    %833 = vmatpush1.msra.mxu0 0.0
    %834 = vmatprep.subr.mxu0 0.0
    %835 = vmatpush1.msra.mxu0 0.0
    %836 = vmatprep.subr.mxu0 0.0
    %837 = vmatpush1.msra.mxu0 0.0
    %838 = vmatprep.subr.mxu0 %v181
    %839 = vmatpush1.msra.mxu0 %v180
    %840 = vmatprep.subr.mxu0 %v179
    %841 = vmatpush1.msra.mxu0 %v178
    %842 = vmatprep.subr.mxu0 %v177
    %843 = vmatpush1.msra.mxu0 %v176
    %844 = vmatprep.subr.mxu0 %v175
    %845 = vmatpush1.msra.mxu0 %v174
    %846 = vmatprep.subr.mxu0 %v173
    %847 = vmatpush1.msra.mxu0 %v172
    %848 = vmatprep.subr.mxu0 %v171
    %849 = vmatpush1.msra.mxu0 %v170
    %850 = vmatprep.subr.mxu0 %v169
    %851 = vmatpush1.msra.mxu0 %v168
    %852 = vmatprep.subr.mxu0 %v167
    %853 = vmatpush1.msra.mxu0 %v166
    %854 = vmatprep.subr.mxu0 0.0
    %855 = vmatpush2.msra.mxu0 0.0
    %856 = vmatprep.subr.mxu0 0.0
    %857 = vmatpush2.msra.mxu0 0.0
    %858 = vmatprep.subr.mxu0 0.0
    %859 = vmatpush2.msra.mxu0 0.0
    %860 = vmatprep.subr.mxu0 0.0
    %861 = vmatpush2.msra.mxu0 0.0
    %862 = vmatprep.subr.mxu0 0.0
    %863 = vmatpush2.msra.mxu0 0.0
    %864 = vmatprep.subr.mxu0 0.0
    %865 = vmatpush2.msra.mxu0 0.0
    %866 = vmatprep.subr.mxu0 0.0
    %867 = vmatpush2.msra.mxu0 0.0
    %868 = vmatprep.subr.mxu0 0.0
    %869 = vmatpush2.msra.mxu0 0.0
    %870 = vmatprep.subr.mxu0 0.0
    %871 = vmatpush2.msra.mxu0 0.0
    %872 = vmatprep.subr.mxu0 0.0
    %873 = vmatpush2.msra.mxu0 0.0
    %874 = vmatprep.subr.mxu0 0.0
    %875 = vmatpush2.msra.mxu0 0.0
    %876 = vmatprep.subr.mxu0 0.0
    %877 = vmatpush2.msra.mxu0 0.0
    %878 = vmatprep.subr.mxu0 0.0
    %879 = vmatpush2.msra.mxu0 0.0
    %880 = vmatprep.subr.mxu0 0.0
    %881 = vmatpush2.msra.mxu0 0.0
    %882 = vmatprep.subr.mxu0 0.0
    %883 = vmatpush2.msra.mxu0 0.0
    %884 = vmatprep.subr.mxu0 0.0
    %885 = vmatpush2.msra.mxu0 0.0
    %886 = vmatprep.mubr.f32.mxu0 0.0
    %887 = vmatmul.mubr.f32.gmra.mxu0 %v820
    %v888 = vpop.f32.mrf.mxu0
    %v889 = vadd.f32 0.0, %v888
    %v890 = vpop.f32.mrf.mxu0
    %v891 = vadd.f32 0.0, %v890
    %892 = vdwg.mxu0
    %v895 = vrot.slane %v889, 4
    %v896 = vrot.slane %v891, 4
    %v899 = vadd.f32 %v162, %v895
    %v900 = vadd.f32 %v164, %v896
    %v901 = vmul.f32 %v899, 0.5
    %v902 = vmul.f32 %v900, 0.5
    %v903 = vtanh.pop %v901
    %v904 = vtanh.pop %v902
    %v905 = vmul.f32 %v903, 0.5
    %v906 = vadd.f32 %v905, 0.5
    %v907 = vmul.f32 %v904, 0.5
    %v908 = vadd.f32 %v907, 0.5
    %v910 = vrot.slane %v809, 6
    %v912 = vmul.f32 %v906, %v910
    %v913 = vmul.f32 %v906, %v904
    %915 = vrot.lane.b32.xlu0 %v913, 64
    %v916 = vpop.permute.xlu0 %915
    %v918 = vadd.f32 %v912, %v916
    %v919 = vtanh.pop %v918
    %v920 = vmul.f32 %v908, %v919
    %922 = vrot.lane.b32.xlu0 %v920, 64
    %v923 = vpop.permute.xlu0 %922
    %925 = vst.msk [vmem:[#allocation2 + $0x8] sm:$0x30] %vm496, %v923
    %v926 = vrot.slane %v920, 4
    %927 = vrot.lane.b32.xlu0 %v926, 64
    %v928 = vpop.permute.xlu0 %927
    %v929 = vsel %vm82, %v928, 0
    %931 = vmatprep.subr.mxu0 0.0
    %932 = vmatpush1.msra.mxu0 0.0
    %933 = vmatprep.subr.mxu0 0.0
    %934 = vmatpush1.msra.mxu0 0.0
    %935 = vmatprep.subr.mxu0 0.0
    %936 = vmatpush1.msra.mxu0 0.0
    %937 = vmatprep.subr.mxu0 0.0
    %938 = vmatpush1.msra.mxu0 0.0
    %939 = vmatprep.subr.mxu0 0.0
    %940 = vmatpush1.msra.mxu0 0.0
    %941 = vmatprep.subr.mxu0 0.0
    %942 = vmatpush1.msra.mxu0 0.0
    %943 = vmatprep.subr.mxu0 0.0
    %944 = vmatpush1.msra.mxu0 0.0
    %945 = vmatprep.subr.mxu0 0.0
    %946 = vmatpush1.msra.mxu0 0.0
    %947 = vmatprep.subr.mxu0 %v181
    %948 = vmatpush1.msra.mxu0 %v180
    %949 = vmatprep.subr.mxu0 %v179
    %950 = vmatpush1.msra.mxu0 %v178
    %951 = vmatprep.subr.mxu0 %v177
    %952 = vmatpush1.msra.mxu0 %v176
    %953 = vmatprep.subr.mxu0 %v175
    %954 = vmatpush1.msra.mxu0 %v174
    %955 = vmatprep.subr.mxu0 %v173
    %956 = vmatpush1.msra.mxu0 %v172
    %957 = vmatprep.subr.mxu0 %v171
    %958 = vmatpush1.msra.mxu0 %v170
    %959 = vmatprep.subr.mxu0 %v169
    %960 = vmatpush1.msra.mxu0 %v168
    %961 = vmatprep.subr.mxu0 %v167
    %962 = vmatpush1.msra.mxu0 %v166
    %963 = vmatprep.subr.mxu0 0.0
    %964 = vmatpush2.msra.mxu0 0.0
    %965 = vmatprep.subr.mxu0 0.0
    %966 = vmatpush2.msra.mxu0 0.0
    %967 = vmatprep.subr.mxu0 0.0
    %968 = vmatpush2.msra.mxu0 0.0
    %969 = vmatprep.subr.mxu0 0.0
    %970 = vmatpush2.msra.mxu0 0.0
    %971 = vmatprep.subr.mxu0 0.0
    %972 = vmatpush2.msra.mxu0 0.0
    %973 = vmatprep.subr.mxu0 0.0
    %974 = vmatpush2.msra.mxu0 0.0
    %975 = vmatprep.subr.mxu0 0.0
    %976 = vmatpush2.msra.mxu0 0.0
    %977 = vmatprep.subr.mxu0 0.0
    %978 = vmatpush2.msra.mxu0 0.0
    %979 = vmatprep.subr.mxu0 0.0
    %980 = vmatpush2.msra.mxu0 0.0
    %981 = vmatprep.subr.mxu0 0.0
    %982 = vmatpush2.msra.mxu0 0.0
    %983 = vmatprep.subr.mxu0 0.0
    %984 = vmatpush2.msra.mxu0 0.0
    %985 = vmatprep.subr.mxu0 0.0
    %986 = vmatpush2.msra.mxu0 0.0
    %987 = vmatprep.subr.mxu0 0.0
    %988 = vmatpush2.msra.mxu0 0.0
    %989 = vmatprep.subr.mxu0 0.0
    %990 = vmatpush2.msra.mxu0 0.0
    %991 = vmatprep.subr.mxu0 0.0
    %992 = vmatpush2.msra.mxu0 0.0
    %993 = vmatprep.subr.mxu0 0.0
    %994 = vmatpush2.msra.mxu0 0.0
    %995 = vmatprep.mubr.f32.mxu0 0.0
    %996 = vmatmul.mubr.f32.gmra.mxu0 %v929
    %v997 = vpop.f32.mrf.mxu0
    %v998 = vadd.f32 0.0, %v997
    %v999 = vpop.f32.mrf.mxu0
    %v1000 = vadd.f32 0.0, %v999
    %1001 = vdwg.mxu0
    %v1004 = vrot.slane %v998, 2
    %v1005 = vrot.slane %v1000, 2
    %v1008 = vadd.f32 %v162, %v1004
    %v1009 = vadd.f32 %v164, %v1005
    %v1010 = vmul.f32 %v1008, 0.5
    %v1011 = vmul.f32 %v1009, 0.5
    %v1012 = vtanh.pop %v1010
    %v1013 = vtanh.pop %v1011
    %v1014 = vmul.f32 %v1012, 0.5
    %v1015 = vadd.f32 %v1014, 0.5
    %v1016 = vmul.f32 %v1013, 0.5
    %v1017 = vadd.f32 %v1016, 0.5
    %v1019 = vrot.slane %v918, 6
    %v1021 = vmul.f32 %v1015, %v1019
    %v1022 = vmul.f32 %v1015, %v1013
    %1024 = vrot.lane.b32.xlu0 %v1022, 64
    %v1025 = vpop.permute.xlu0 %1024
    %v1027 = vadd.f32 %v1021, %v1025
    %v1028 = vtanh.pop %v1027
    %v1029 = vmul.f32 %v1017, %v1028
    %1031 = vrot.lane.b32.xlu0 %v1029, 64
    %v1032 = vpop.permute.xlu0 %1031
    %1034 = vst.msk [vmem:[#allocation2 + $0x8] sm:$0xc0] %vm606, %v1032
    %v1035 = vld [vmem:[#allocation2] sm:$0xff]
    %v1036 = vld [vmem:[#allocation2 + $0x8] sm:$0xff]
    %s1037 = scalar_lea.vmem [#allocation3], 128
    %v1038 = vld [vmem:[%s1037] sm:$0xff]
    %v1039 = vld [vmem:[%s1037 + $0x8] sm:$0xff]
    %v1040 = vld [vmem:[%s1037 + $0x10] sm:$0xff]
    %v1041 = vld [vmem:[%s1037 + $0x18] sm:$0xff]
    %v1042 = vld [vmem:[%s1037 + $0x20] sm:$0xff]
    %v1043 = vld [vmem:[%s1037 + $0x28] sm:$0xff]
    %v1044 = vld [vmem:[%s1037 + $0x30] sm:$0xff]
    %v1045 = vld [vmem:[%s1037 + $0x38] sm:$0xff]
    %v1046 = vld [vmem:[%s1037 + $0x40] sm:$0xff]
    %v1047 = vld [vmem:[%s1037 + $0x48] sm:$0xff]
    %v1048 = vld [vmem:[%s1037 + $0x50] sm:$0xff]
    %v1049 = vld [vmem:[%s1037 + $0x58] sm:$0xff]
    %v1050 = vld [vmem:[%s1037 + $0x60] sm:$0xff]
    %v1051 = vld [vmem:[%s1037 + $0x68] sm:$0xff]
    %v1052 = vld [vmem:[%s1037 + $0x70] sm:$0xff]
    %v1053 = vld [vmem:[%s1037 + $0x78] sm:$0xff]
    %s1054 = scalar_lea.vmem %s3, 2
    %v1055 = vld [vmem:[%s1054] sm:$0x3]
    %v1057 = vlaneseq
    %v1058 = vshrl.u32 %v1057, 7
    %v1059 = vsub.s32 0, %v1058
    %v1060 = vrot.slane %v1055, %v1059
    %v1061 = vlaneseq
    %v1062 = vshrl.u32 %v1061, 7
    %v1063 = vsub.s32 1, %v1062
    %v1064 = vrot.slane %v1055, %v1063
    %v1068 = vsel %vm82, %v1035, 0
    %v1071 = vsel %vm82, %v1036, 0
    %1073 = vmatprep.subr.mxu0 0.0
    %1074 = vmatpush1.msra.mxu0 0.0
    %1075 = vmatprep.subr.mxu0 0.0
    %1076 = vmatpush1.msra.mxu0 0.0
    %1077 = vmatprep.subr.mxu0 0.0
    %1078 = vmatpush1.msra.mxu0 0.0
    %1079 = vmatprep.subr.mxu0 0.0
    %1080 = vmatpush1.msra.mxu0 0.0
    %1081 = vmatprep.subr.mxu0 0.0
    %1082 = vmatpush1.msra.mxu0 0.0
    %1083 = vmatprep.subr.mxu0 0.0
    %1084 = vmatpush1.msra.mxu0 0.0
    %1085 = vmatprep.subr.mxu0 0.0
    %1086 = vmatpush1.msra.mxu0 0.0
    %1087 = vmatprep.subr.mxu0 0.0
    %1088 = vmatpush1.msra.mxu0 0.0
    %1089 = vmatprep.subr.mxu0 %v1053
    %1090 = vmatpush1.msra.mxu0 %v1052
    %1091 = vmatprep.subr.mxu0 %v1051
    %1092 = vmatpush1.msra.mxu0 %v1050
    %1093 = vmatprep.subr.mxu0 %v1049
    %1094 = vmatpush1.msra.mxu0 %v1048
    %1095 = vmatprep.subr.mxu0 %v1047
    %1096 = vmatpush1.msra.mxu0 %v1046
    %1097 = vmatprep.subr.mxu0 %v1045
    %1098 = vmatpush1.msra.mxu0 %v1044
    %1099 = vmatprep.subr.mxu0 %v1043
    %1100 = vmatpush1.msra.mxu0 %v1042
    %1101 = vmatprep.subr.mxu0 %v1041
    %1102 = vmatpush1.msra.mxu0 %v1040
    %1103 = vmatprep.subr.mxu0 %v1039
    %1104 = vmatpush1.msra.mxu0 %v1038
    %1105 = vmatprep.subr.mxu0 0.0
    %1106 = vmatpush2.msra.mxu0 0.0
    %1107 = vmatprep.subr.mxu0 0.0
    %1108 = vmatpush2.msra.mxu0 0.0
    %1109 = vmatprep.subr.mxu0 0.0
    %1110 = vmatpush2.msra.mxu0 0.0
    %1111 = vmatprep.subr.mxu0 0.0
    %1112 = vmatpush2.msra.mxu0 0.0
    %1113 = vmatprep.subr.mxu0 0.0
    %1114 = vmatpush2.msra.mxu0 0.0
    %1115 = vmatprep.subr.mxu0 0.0
    %1116 = vmatpush2.msra.mxu0 0.0
    %1117 = vmatprep.subr.mxu0 0.0
    %1118 = vmatpush2.msra.mxu0 0.0
    %1119 = vmatprep.subr.mxu0 0.0
    %1120 = vmatpush2.msra.mxu0 0.0
    %1121 = vmatprep.subr.mxu0 0.0
    %1122 = vmatpush2.msra.mxu0 0.0
    %1123 = vmatprep.subr.mxu0 0.0
    %1124 = vmatpush2.msra.mxu0 0.0
    %1125 = vmatprep.subr.mxu0 0.0
    %1126 = vmatpush2.msra.mxu0 0.0
    %1127 = vmatprep.subr.mxu0 0.0
    %1128 = vmatpush2.msra.mxu0 0.0
    %1129 = vmatprep.subr.mxu0 0.0
    %1130 = vmatpush2.msra.mxu0 0.0
    %1131 = vmatprep.subr.mxu0 0.0
    %1132 = vmatpush2.msra.mxu0 0.0
    %1133 = vmatprep.subr.mxu0 0.0
    %1134 = vmatpush2.msra.mxu0 0.0
    %1135 = vmatprep.subr.mxu0 0.0
    %1136 = vmatpush2.msra.mxu0 0.0
    %1137 = vmatprep.mubr.f32.mxu0 0.0
    %1138 = vmatmul.mubr.f32.gmra.mxu0 %v1068
    %v1139 = vpop.f32.mrf.mxu0
    %v1140 = vadd.f32 %v1060, %v1139
    %v1141 = vpop.f32.mrf.mxu0
    %v1142 = vadd.f32 %v1064, %v1141
    %1143 = vmatprep.mubr.f32.mxu0 0.0
    %1144 = vmatmul.mubr.f32.gmra.mxu0 %v1071
    %v1145 = vpop.f32.mrf.mxu0
    %v1146 = vadd.f32 %v1060, %v1145
    %v1147 = vpop.f32.mrf.mxu0
    %v1148 = vadd.f32 %v1064, %v1147
    %1149 = vdwg.mxu0
    %s1150 = scalar_lea.vmem [#allocation6], 128
    %v1151 = vld [vmem:[%s1150] sm:$0xff]
    %v1152 = vld [vmem:[%s1150 + $0x8] sm:$0xff]
    %v1153 = vld [vmem:[%s1150 + $0x10] sm:$0xff]
    %v1154 = vld [vmem:[%s1150 + $0x18] sm:$0xff]
    %v1155 = vld [vmem:[%s1150 + $0x20] sm:$0xff]
    %v1156 = vld [vmem:[%s1150 + $0x28] sm:$0xff]
    %v1157 = vld [vmem:[%s1150 + $0x30] sm:$0xff]
    %v1158 = vld [vmem:[%s1150 + $0x38] sm:$0xff]
    %v1159 = vld [vmem:[%s1150 + $0x40] sm:$0xff]
    %v1160 = vld [vmem:[%s1150 + $0x48] sm:$0xff]
    %v1161 = vld [vmem:[%s1150 + $0x50] sm:$0xff]
    %v1162 = vld [vmem:[%s1150 + $0x58] sm:$0xff]
    %v1163 = vld [vmem:[%s1150 + $0x60] sm:$0xff]
    %v1164 = vld [vmem:[%s1150 + $0x68] sm:$0xff]
    %v1165 = vld [vmem:[%s1150 + $0x70] sm:$0xff]
    %v1166 = vld [vmem:[%s1150 + $0x78] sm:$0xff]
    %1167 = vmatprep.subr.mxu0 0.0
    %1168 = vmatpush1.msra.mxu0 0.0
    %1169 = vmatprep.subr.mxu0 0.0
    %1170 = vmatpush1.msra.mxu0 0.0
    %1171 = vmatprep.subr.mxu0 0.0
    %1172 = vmatpush1.msra.mxu0 0.0
    %1173 = vmatprep.subr.mxu0 0.0
    %1174 = vmatpush1.msra.mxu0 0.0
    %1175 = vmatprep.subr.mxu0 0.0
    %1176 = vmatpush1.msra.mxu0 0.0
    %1177 = vmatprep.subr.mxu0 0.0
    %1178 = vmatpush1.msra.mxu0 0.0
    %1179 = vmatprep.subr.mxu0 0.0
    %1180 = vmatpush1.msra.mxu0 0.0
    %1181 = vmatprep.subr.mxu0 0.0
    %1182 = vmatpush1.msra.mxu0 0.0
    %1183 = vmatprep.subr.mxu0 %v1166
    %1184 = vmatpush1.msra.mxu0 %v1165
    %1185 = vmatprep.subr.mxu0 %v1164
    %1186 = vmatpush1.msra.mxu0 %v1163
    %1187 = vmatprep.subr.mxu0 %v1162
    %1188 = vmatpush1.msra.mxu0 %v1161
    %1189 = vmatprep.subr.mxu0 %v1160
    %1190 = vmatpush1.msra.mxu0 %v1159
    %1191 = vmatprep.subr.mxu0 %v1158
    %1192 = vmatpush1.msra.mxu0 %v1157
    %1193 = vmatprep.subr.mxu0 %v1156
    %1194 = vmatpush1.msra.mxu0 %v1155
    %1195 = vmatprep.subr.mxu0 %v1154
    %1196 = vmatpush1.msra.mxu0 %v1153
    %1197 = vmatprep.subr.mxu0 %v1152
    %1198 = vmatpush1.msra.mxu0 %v1151
    %1199 = vmatprep.subr.mxu0 0.0
    %1200 = vmatpush2.msra.mxu0 0.0
    %1201 = vmatprep.subr.mxu0 0.0
    %1202 = vmatpush2.msra.mxu0 0.0
    %1203 = vmatprep.subr.mxu0 0.0
    %1204 = vmatpush2.msra.mxu0 0.0
    %1205 = vmatprep.subr.mxu0 0.0
    %1206 = vmatpush2.msra.mxu0 0.0
    %1207 = vmatprep.subr.mxu0 0.0
    %1208 = vmatpush2.msra.mxu0 0.0
    %1209 = vmatprep.subr.mxu0 0.0
    %1210 = vmatpush2.msra.mxu0 0.0
    %1211 = vmatprep.subr.mxu0 0.0
    %1212 = vmatpush2.msra.mxu0 0.0
    %1213 = vmatprep.subr.mxu0 0.0
    %1214 = vmatpush2.msra.mxu0 0.0
    %1215 = vmatprep.subr.mxu0 0.0
    %1216 = vmatpush2.msra.mxu0 0.0
    %1217 = vmatprep.subr.mxu0 0.0
    %1218 = vmatpush2.msra.mxu0 0.0
    %1219 = vmatprep.subr.mxu0 0.0
    %1220 = vmatpush2.msra.mxu0 0.0
    %1221 = vmatprep.subr.mxu0 0.0
    %1222 = vmatpush2.msra.mxu0 0.0
    %1223 = vmatprep.subr.mxu0 0.0
    %1224 = vmatpush2.msra.mxu0 0.0
    %1225 = vmatprep.subr.mxu0 0.0
    %1226 = vmatpush2.msra.mxu0 0.0
    %1227 = vmatprep.subr.mxu0 0.0
    %1228 = vmatpush2.msra.mxu0 0.0
    %1229 = vmatprep.subr.mxu0 0.0
    %1230 = vmatpush2.msra.mxu0 0.0
    %1231 = vmatprep.mubr.f32.mxu0 0.0
    %1232 = vmatmul.mubr.f32.gmra.mxu0 %v183
    %v1233 = vpop.f32.mrf.mxu0
    %v1234 = vadd.f32 0.0, %v1233
    %v1235 = vpop.f32.mrf.mxu0
    %v1236 = vadd.f32 0.0, %v1235
    %1237 = vdwg.mxu0
    %v1238 = vadd.f32 %v1140, %v1234
    %v1239 = vadd.f32 %v1142, %v1236
    %v1240 = vmul.f32 %v1238, 0.5
    %v1241 = vmul.f32 %v1239, 0.5
    %v1242 = vtanh.pop %v1240
    %v1243 = vtanh.pop %v1241
    %v1244 = vmul.f32 %v1242, 0.5
    %v1245 = vadd.f32 %v1244, 0.5
    %v1246 = vmul.f32 %v1243, 0.5
    %v1247 = vadd.f32 %v1246, 0.5
    %v1248 = vmul.f32 %v1245, 0.0
    %v1249 = vmul.f32 %v1245, %v1243
    %1251 = vrot.lane.b32.xlu0 %v1249, 64
    %v1252 = vpop.permute.xlu0 %1251
    %v1254 = vadd.f32 %v1248, %v1252
    %v1255 = vtanh.pop %v1254
    %v1256 = vmul.f32 %v1247, %v1255
    %1258 = vrot.lane.b32.xlu0 %v1256, 64
    %v1259 = vpop.permute.xlu0 %1258
    %v1260 = vsel %vm82, %v1259, 0
    %1262 = vmatprep.subr.mxu0 0.0
    %1263 = vmatpush1.msra.mxu0 0.0
    %1264 = vmatprep.subr.mxu0 0.0
    %1265 = vmatpush1.msra.mxu0 0.0
    %1266 = vmatprep.subr.mxu0 0.0
    %1267 = vmatpush1.msra.mxu0 0.0
    %1268 = vmatprep.subr.mxu0 0.0
    %1269 = vmatpush1.msra.mxu0 0.0
    %1270 = vmatprep.subr.mxu0 0.0
    %1271 = vmatpush1.msra.mxu0 0.0
    %1272 = vmatprep.subr.mxu0 0.0
    %1273 = vmatpush1.msra.mxu0 0.0
    %1274 = vmatprep.subr.mxu0 0.0
    %1275 = vmatpush1.msra.mxu0 0.0
    %1276 = vmatprep.subr.mxu0 0.0
    %1277 = vmatpush1.msra.mxu0 0.0
    %1278 = vmatprep.subr.mxu0 %v1166
    %1279 = vmatpush1.msra.mxu0 %v1165
    %1280 = vmatprep.subr.mxu0 %v1164
    %1281 = vmatpush1.msra.mxu0 %v1163
    %1282 = vmatprep.subr.mxu0 %v1162
    %1283 = vmatpush1.msra.mxu0 %v1161
    %1284 = vmatprep.subr.mxu0 %v1160
    %1285 = vmatpush1.msra.mxu0 %v1159
    %1286 = vmatprep.subr.mxu0 %v1158
    %1287 = vmatpush1.msra.mxu0 %v1157
    %1288 = vmatprep.subr.mxu0 %v1156
    %1289 = vmatpush1.msra.mxu0 %v1155
    %1290 = vmatprep.subr.mxu0 %v1154
    %1291 = vmatpush1.msra.mxu0 %v1153
    %1292 = vmatprep.subr.mxu0 %v1152
    %1293 = vmatpush1.msra.mxu0 %v1151
    %1294 = vmatprep.subr.mxu0 0.0
    %1295 = vmatpush2.msra.mxu0 0.0
    %1296 = vmatprep.subr.mxu0 0.0
    %1297 = vmatpush2.msra.mxu0 0.0
    %1298 = vmatprep.subr.mxu0 0.0
    %1299 = vmatpush2.msra.mxu0 0.0
    %1300 = vmatprep.subr.mxu0 0.0
    %1301 = vmatpush2.msra.mxu0 0.0
    %1302 = vmatprep.subr.mxu0 0.0
    %1303 = vmatpush2.msra.mxu0 0.0
    %1304 = vmatprep.subr.mxu0 0.0
    %1305 = vmatpush2.msra.mxu0 0.0
    %1306 = vmatprep.subr.mxu0 0.0
    %1307 = vmatpush2.msra.mxu0 0.0
    %1308 = vmatprep.subr.mxu0 0.0
    %1309 = vmatpush2.msra.mxu0 0.0
    %1310 = vmatprep.subr.mxu0 0.0
    %1311 = vmatpush2.msra.mxu0 0.0
    %1312 = vmatprep.subr.mxu0 0.0
    %1313 = vmatpush2.msra.mxu0 0.0
    %1314 = vmatprep.subr.mxu0 0.0
    %1315 = vmatpush2.msra.mxu0 0.0
    %1316 = vmatprep.subr.mxu0 0.0
    %1317 = vmatpush2.msra.mxu0 0.0
    %1318 = vmatprep.subr.mxu0 0.0
    %1319 = vmatpush2.msra.mxu0 0.0
    %1320 = vmatprep.subr.mxu0 0.0
    %1321 = vmatpush2.msra.mxu0 0.0
    %1322 = vmatprep.subr.mxu0 0.0
    %1323 = vmatpush2.msra.mxu0 0.0
    %1324 = vmatprep.subr.mxu0 0.0
    %1325 = vmatpush2.msra.mxu0 0.0
    %1326 = vmatprep.mubr.f32.mxu0 0.0
    %1327 = vmatmul.mubr.f32.gmra.mxu0 %v1260
    %v1328 = vpop.f32.mrf.mxu0
    %v1329 = vadd.f32 0.0, %v1328
    %v1330 = vpop.f32.mrf.mxu0
    %v1331 = vadd.f32 0.0, %v1330
    %1332 = vdwg.mxu0
    %v1335 = vrot.slane %v1329, 6
    %v1336 = vrot.slane %v1331, 6
    %v1339 = vadd.f32 %v1140, %v1335
    %v1340 = vadd.f32 %v1142, %v1336
    %v1341 = vmul.f32 %v1339, 0.5
    %v1342 = vmul.f32 %v1340, 0.5
    %v1343 = vtanh.pop %v1341
    %v1344 = vtanh.pop %v1342
    %v1345 = vmul.f32 %v1343, 0.5
    %v1346 = vadd.f32 %v1345, 0.5
    %v1347 = vmul.f32 %v1344, 0.5
    %v1348 = vadd.f32 %v1347, 0.5
    %v1350 = vrot.slane %v1254, 6
    %v1352 = vmul.f32 %v1346, %v1350
    %v1353 = vmul.f32 %v1346, %v1344
    %1355 = vrot.lane.b32.xlu0 %v1353, 64
    %v1356 = vpop.permute.xlu0 %1355
    %v1358 = vadd.f32 %v1352, %v1356
    %v1359 = vtanh.pop %v1358
    %v1360 = vmul.f32 %v1348, %v1359
    %v1362 = vrot.slane %v1360, 2
    %1363 = vrot.lane.b32.xlu0 %v1362, 64
    %v1364 = vpop.permute.xlu0 %1363
    %v1365 = vsel %vm82, %v1364, 0
    %1367 = vmatprep.subr.mxu0 0.0
    %1368 = vmatpush1.msra.mxu0 0.0
    %1369 = vmatprep.subr.mxu0 0.0
    %1370 = vmatpush1.msra.mxu0 0.0
    %1371 = vmatprep.subr.mxu0 0.0
    %1372 = vmatpush1.msra.mxu0 0.0
    %1373 = vmatprep.subr.mxu0 0.0
    %1374 = vmatpush1.msra.mxu0 0.0
    %1375 = vmatprep.subr.mxu0 0.0
    %1376 = vmatpush1.msra.mxu0 0.0
    %1377 = vmatprep.subr.mxu0 0.0
    %1378 = vmatpush1.msra.mxu0 0.0
    %1379 = vmatprep.subr.mxu0 0.0
    %1380 = vmatpush1.msra.mxu0 0.0
    %1381 = vmatprep.subr.mxu0 0.0
    %1382 = vmatpush1.msra.mxu0 0.0
    %1383 = vmatprep.subr.mxu0 %v1166
    %1384 = vmatpush1.msra.mxu0 %v1165
    %1385 = vmatprep.subr.mxu0 %v1164
    %1386 = vmatpush1.msra.mxu0 %v1163
    %1387 = vmatprep.subr.mxu0 %v1162
    %1388 = vmatpush1.msra.mxu0 %v1161
    %1389 = vmatprep.subr.mxu0 %v1160
    %1390 = vmatpush1.msra.mxu0 %v1159
    %1391 = vmatprep.subr.mxu0 %v1158
    %1392 = vmatpush1.msra.mxu0 %v1157
    %1393 = vmatprep.subr.mxu0 %v1156
    %1394 = vmatpush1.msra.mxu0 %v1155
    %1395 = vmatprep.subr.mxu0 %v1154
    %1396 = vmatpush1.msra.mxu0 %v1153
    %1397 = vmatprep.subr.mxu0 %v1152
    %1398 = vmatpush1.msra.mxu0 %v1151
    %1399 = vmatprep.subr.mxu0 0.0
    %1400 = vmatpush2.msra.mxu0 0.0
    %1401 = vmatprep.subr.mxu0 0.0
    %1402 = vmatpush2.msra.mxu0 0.0
    %1403 = vmatprep.subr.mxu0 0.0
    %1404 = vmatpush2.msra.mxu0 0.0
    %1405 = vmatprep.subr.mxu0 0.0
    %1406 = vmatpush2.msra.mxu0 0.0
    %1407 = vmatprep.subr.mxu0 0.0
    %1408 = vmatpush2.msra.mxu0 0.0
    %1409 = vmatprep.subr.mxu0 0.0
    %1410 = vmatpush2.msra.mxu0 0.0
    %1411 = vmatprep.subr.mxu0 0.0
    %1412 = vmatpush2.msra.mxu0 0.0
    %1413 = vmatprep.subr.mxu0 0.0
    %1414 = vmatpush2.msra.mxu0 0.0
    %1415 = vmatprep.subr.mxu0 0.0
    %1416 = vmatpush2.msra.mxu0 0.0
    %1417 = vmatprep.subr.mxu0 0.0
    %1418 = vmatpush2.msra.mxu0 0.0
    %1419 = vmatprep.subr.mxu0 0.0
    %1420 = vmatpush2.msra.mxu0 0.0
    %1421 = vmatprep.subr.mxu0 0.0
    %1422 = vmatpush2.msra.mxu0 0.0
    %1423 = vmatprep.subr.mxu0 0.0
    %1424 = vmatpush2.msra.mxu0 0.0
    %1425 = vmatprep.subr.mxu0 0.0
    %1426 = vmatpush2.msra.mxu0 0.0
    %1427 = vmatprep.subr.mxu0 0.0
    %1428 = vmatpush2.msra.mxu0 0.0
    %1429 = vmatprep.subr.mxu0 0.0
    %1430 = vmatpush2.msra.mxu0 0.0
    %1431 = vmatprep.mubr.f32.mxu0 0.0
    %1432 = vmatmul.mubr.f32.gmra.mxu0 %v1365
    %v1433 = vpop.f32.mrf.mxu0
    %v1434 = vadd.f32 0.0, %v1433
    %v1435 = vpop.f32.mrf.mxu0
    %v1436 = vadd.f32 0.0, %v1435
    %1437 = vdwg.mxu0
    %v1440 = vrot.slane %v1434, 4
    %v1441 = vrot.slane %v1436, 4
    %v1444 = vadd.f32 %v1140, %v1440
    %v1445 = vadd.f32 %v1142, %v1441
    %v1446 = vmul.f32 %v1444, 0.5
    %v1447 = vmul.f32 %v1445, 0.5
    %v1448 = vtanh.pop %v1446
    %v1449 = vtanh.pop %v1447
    %v1450 = vmul.f32 %v1448, 0.5
    %v1451 = vadd.f32 %v1450, 0.5
    %v1452 = vmul.f32 %v1449, 0.5
    %v1453 = vadd.f32 %v1452, 0.5
    %v1455 = vrot.slane %v1358, 6
    %v1457 = vmul.f32 %v1451, %v1455
    %v1458 = vmul.f32 %v1451, %v1449
    %1460 = vrot.lane.b32.xlu0 %v1458, 64
    %v1461 = vpop.permute.xlu0 %1460
    %v1463 = vadd.f32 %v1457, %v1461
    %v1464 = vtanh.pop %v1463
    %v1465 = vmul.f32 %v1453, %v1464
    %v1467 = vrot.slane %v1465, 4
    %1468 = vrot.lane.b32.xlu0 %v1467, 64
    %v1469 = vpop.permute.xlu0 %1468
    %v1470 = vsel %vm82, %v1469, 0
    %1472 = vmatprep.subr.mxu0 0.0
    %1473 = vmatpush1.msra.mxu0 0.0
    %1474 = vmatprep.subr.mxu0 0.0
    %1475 = vmatpush1.msra.mxu0 0.0
    %1476 = vmatprep.subr.mxu0 0.0
    %1477 = vmatpush1.msra.mxu0 0.0
    %1478 = vmatprep.subr.mxu0 0.0
    %1479 = vmatpush1.msra.mxu0 0.0
    %1480 = vmatprep.subr.mxu0 0.0
    %1481 = vmatpush1.msra.mxu0 0.0
    %1482 = vmatprep.subr.mxu0 0.0
    %1483 = vmatpush1.msra.mxu0 0.0
    %1484 = vmatprep.subr.mxu0 0.0
    %1485 = vmatpush1.msra.mxu0 0.0
    %1486 = vmatprep.subr.mxu0 0.0
    %1487 = vmatpush1.msra.mxu0 0.0
    %1488 = vmatprep.subr.mxu0 %v1166
    %1489 = vmatpush1.msra.mxu0 %v1165
    %1490 = vmatprep.subr.mxu0 %v1164
    %1491 = vmatpush1.msra.mxu0 %v1163
    %1492 = vmatprep.subr.mxu0 %v1162
    %1493 = vmatpush1.msra.mxu0 %v1161
    %1494 = vmatprep.subr.mxu0 %v1160
    %1495 = vmatpush1.msra.mxu0 %v1159
    %1496 = vmatprep.subr.mxu0 %v1158
    %1497 = vmatpush1.msra.mxu0 %v1157
    %1498 = vmatprep.subr.mxu0 %v1156
    %1499 = vmatpush1.msra.mxu0 %v1155
    %1500 = vmatprep.subr.mxu0 %v1154
    %1501 = vmatpush1.msra.mxu0 %v1153
    %1502 = vmatprep.subr.mxu0 %v1152
    %1503 = vmatpush1.msra.mxu0 %v1151
    %1504 = vmatprep.subr.mxu0 0.0
    %1505 = vmatpush2.msra.mxu0 0.0
    %1506 = vmatprep.subr.mxu0 0.0
    %1507 = vmatpush2.msra.mxu0 0.0
    %1508 = vmatprep.subr.mxu0 0.0
    %1509 = vmatpush2.msra.mxu0 0.0
    %1510 = vmatprep.subr.mxu0 0.0
    %1511 = vmatpush2.msra.mxu0 0.0
    %1512 = vmatprep.subr.mxu0 0.0
    %1513 = vmatpush2.msra.mxu0 0.0
    %1514 = vmatprep.subr.mxu0 0.0
    %1515 = vmatpush2.msra.mxu0 0.0
    %1516 = vmatprep.subr.mxu0 0.0
    %1517 = vmatpush2.msra.mxu0 0.0
    %1518 = vmatprep.subr.mxu0 0.0
    %1519 = vmatpush2.msra.mxu0 0.0
    %1520 = vmatprep.subr.mxu0 0.0
    %1521 = vmatpush2.msra.mxu0 0.0
    %1522 = vmatprep.subr.mxu0 0.0
    %1523 = vmatpush2.msra.mxu0 0.0
    %1524 = vmatprep.subr.mxu0 0.0
    %1525 = vmatpush2.msra.mxu0 0.0
    %1526 = vmatprep.subr.mxu0 0.0
    %1527 = vmatpush2.msra.mxu0 0.0
    %1528 = vmatprep.subr.mxu0 0.0
    %1529 = vmatpush2.msra.mxu0 0.0
    %1530 = vmatprep.subr.mxu0 0.0
    %1531 = vmatpush2.msra.mxu0 0.0
    %1532 = vmatprep.subr.mxu0 0.0
    %1533 = vmatpush2.msra.mxu0 0.0
    %1534 = vmatprep.subr.mxu0 0.0
    %1535 = vmatpush2.msra.mxu0 0.0
    %1536 = vmatprep.mubr.f32.mxu0 0.0
    %1537 = vmatmul.mubr.f32.gmra.mxu0 %v1470
    %v1538 = vpop.f32.mrf.mxu0
    %v1539 = vadd.f32 0.0, %v1538
    %v1540 = vpop.f32.mrf.mxu0
    %v1541 = vadd.f32 0.0, %v1540
    %1542 = vdwg.mxu0
    %v1545 = vrot.slane %v1539, 2
    %v1546 = vrot.slane %v1541, 2
    %v1549 = vadd.f32 %v1140, %v1545
    %v1550 = vadd.f32 %v1142, %v1546
    %v1551 = vmul.f32 %v1549, 0.5
    %v1552 = vmul.f32 %v1550, 0.5
    %v1553 = vtanh.pop %v1551
    %v1554 = vtanh.pop %v1552
    %v1555 = vmul.f32 %v1553, 0.5
    %v1556 = vadd.f32 %v1555, 0.5
    %v1557 = vmul.f32 %v1554, 0.5
    %v1558 = vadd.f32 %v1557, 0.5
    %v1560 = vrot.slane %v1463, 6
    %v1562 = vmul.f32 %v1556, %v1560
    %v1563 = vmul.f32 %v1556, %v1554
    %1565 = vrot.lane.b32.xlu0 %v1563, 64
    %v1566 = vpop.permute.xlu0 %1565
    %v1568 = vadd.f32 %v1562, %v1566
    %v1569 = vtanh.pop %v1568
    %v1570 = vmul.f32 %v1558, %v1569
    %v1572 = vrot.slane %v1570, 6
    %1573 = vrot.lane.b32.xlu0 %v1572, 64
    %v1574 = vpop.permute.xlu0 %1573
    %v1575 = vsel %vm82, %v1574, 0
    %1577 = vmatprep.subr.mxu0 0.0
    %1578 = vmatpush1.msra.mxu0 0.0
    %1579 = vmatprep.subr.mxu0 0.0
    %1580 = vmatpush1.msra.mxu0 0.0
    %1581 = vmatprep.subr.mxu0 0.0
    %1582 = vmatpush1.msra.mxu0 0.0
    %1583 = vmatprep.subr.mxu0 0.0
    %1584 = vmatpush1.msra.mxu0 0.0
    %1585 = vmatprep.subr.mxu0 0.0
    %1586 = vmatpush1.msra.mxu0 0.0
    %1587 = vmatprep.subr.mxu0 0.0
    %1588 = vmatpush1.msra.mxu0 0.0
    %1589 = vmatprep.subr.mxu0 0.0
    %1590 = vmatpush1.msra.mxu0 0.0
    %1591 = vmatprep.subr.mxu0 0.0
    %1592 = vmatpush1.msra.mxu0 0.0
    %1593 = vmatprep.subr.mxu0 %v1166
    %1594 = vmatpush1.msra.mxu0 %v1165
    %1595 = vmatprep.subr.mxu0 %v1164
    %1596 = vmatpush1.msra.mxu0 %v1163
    %1597 = vmatprep.subr.mxu0 %v1162
    %1598 = vmatpush1.msra.mxu0 %v1161
    %1599 = vmatprep.subr.mxu0 %v1160
    %1600 = vmatpush1.msra.mxu0 %v1159
    %1601 = vmatprep.subr.mxu0 %v1158
    %1602 = vmatpush1.msra.mxu0 %v1157
    %1603 = vmatprep.subr.mxu0 %v1156
    %1604 = vmatpush1.msra.mxu0 %v1155
    %1605 = vmatprep.subr.mxu0 %v1154
    %1606 = vmatpush1.msra.mxu0 %v1153
    %1607 = vmatprep.subr.mxu0 %v1152
    %1608 = vmatpush1.msra.mxu0 %v1151
    %1609 = vmatprep.subr.mxu0 0.0
    %1610 = vmatpush2.msra.mxu0 0.0
    %1611 = vmatprep.subr.mxu0 0.0
    %1612 = vmatpush2.msra.mxu0 0.0
    %1613 = vmatprep.subr.mxu0 0.0
    %1614 = vmatpush2.msra.mxu0 0.0
    %1615 = vmatprep.subr.mxu0 0.0
    %1616 = vmatpush2.msra.mxu0 0.0
    %1617 = vmatprep.subr.mxu0 0.0
    %1618 = vmatpush2.msra.mxu0 0.0
    %1619 = vmatprep.subr.mxu0 0.0
    %1620 = vmatpush2.msra.mxu0 0.0
    %1621 = vmatprep.subr.mxu0 0.0
    %1622 = vmatpush2.msra.mxu0 0.0
    %1623 = vmatprep.subr.mxu0 0.0
    %1624 = vmatpush2.msra.mxu0 0.0
    %1625 = vmatprep.subr.mxu0 0.0
    %1626 = vmatpush2.msra.mxu0 0.0
    %1627 = vmatprep.subr.mxu0 0.0
    %1628 = vmatpush2.msra.mxu0 0.0
    %1629 = vmatprep.subr.mxu0 0.0
    %1630 = vmatpush2.msra.mxu0 0.0
    %1631 = vmatprep.subr.mxu0 0.0
    %1632 = vmatpush2.msra.mxu0 0.0
    %1633 = vmatprep.subr.mxu0 0.0
    %1634 = vmatpush2.msra.mxu0 0.0
    %1635 = vmatprep.subr.mxu0 0.0
    %1636 = vmatpush2.msra.mxu0 0.0
    %1637 = vmatprep.subr.mxu0 0.0
    %1638 = vmatpush2.msra.mxu0 0.0
    %1639 = vmatprep.subr.mxu0 0.0
    %1640 = vmatpush2.msra.mxu0 0.0
    %1641 = vmatprep.mubr.f32.mxu0 0.0
    %1642 = vmatmul.mubr.f32.gmra.mxu0 %v1575
    %v1643 = vpop.f32.mrf.mxu0
    %v1644 = vadd.f32 0.0, %v1643
    %v1645 = vpop.f32.mrf.mxu0
    %v1646 = vadd.f32 0.0, %v1645
    %1647 = vdwg.mxu0
    %v1648 = vadd.f32 %v1146, %v1644
    %v1649 = vadd.f32 %v1148, %v1646
    %v1650 = vmul.f32 %v1648, 0.5
    %v1651 = vmul.f32 %v1649, 0.5
    %v1652 = vtanh.pop %v1650
    %v1653 = vtanh.pop %v1651
    %v1654 = vmul.f32 %v1652, 0.5
    %v1655 = vadd.f32 %v1654, 0.5
    %v1656 = vmul.f32 %v1653, 0.5
    %v1657 = vadd.f32 %v1656, 0.5
    %v1659 = vrot.slane %v1568, 6
    %v1661 = vmul.f32 %v1655, %v1659
    %v1662 = vmul.f32 %v1655, %v1653
    %1664 = vrot.lane.b32.xlu0 %v1662, 64
    %v1665 = vpop.permute.xlu0 %1664
    %v1667 = vadd.f32 %v1661, %v1665
    %v1668 = vtanh.pop %v1667
    %v1669 = vmul.f32 %v1657, %v1668
    %1671 = vrot.lane.b32.xlu0 %v1669, 64
    %v1672 = vpop.permute.xlu0 %1671
    %v1673 = vsel %vm82, %v1672, 0
    %1675 = vmatprep.subr.mxu0 0.0
    %1676 = vmatpush1.msra.mxu0 0.0
    %1677 = vmatprep.subr.mxu0 0.0
    %1678 = vmatpush1.msra.mxu0 0.0
    %1679 = vmatprep.subr.mxu0 0.0
    %1680 = vmatpush1.msra.mxu0 0.0
    %1681 = vmatprep.subr.mxu0 0.0
    %1682 = vmatpush1.msra.mxu0 0.0
    %1683 = vmatprep.subr.mxu0 0.0
    %1684 = vmatpush1.msra.mxu0 0.0
    %1685 = vmatprep.subr.mxu0 0.0
    %1686 = vmatpush1.msra.mxu0 0.0
    %1687 = vmatprep.subr.mxu0 0.0
    %1688 = vmatpush1.msra.mxu0 0.0
    %1689 = vmatprep.subr.mxu0 0.0
    %1690 = vmatpush1.msra.mxu0 0.0
    %1691 = vmatprep.subr.mxu0 %v1166
    %1692 = vmatpush1.msra.mxu0 %v1165
    %1693 = vmatprep.subr.mxu0 %v1164
    %1694 = vmatpush1.msra.mxu0 %v1163
    %1695 = vmatprep.subr.mxu0 %v1162
    %1696 = vmatpush1.msra.mxu0 %v1161
    %1697 = vmatprep.subr.mxu0 %v1160
    %1698 = vmatpush1.msra.mxu0 %v1159
    %1699 = vmatprep.subr.mxu0 %v1158
    %1700 = vmatpush1.msra.mxu0 %v1157
    %1701 = vmatprep.subr.mxu0 %v1156
    %1702 = vmatpush1.msra.mxu0 %v1155
    %1703 = vmatprep.subr.mxu0 %v1154
    %1704 = vmatpush1.msra.mxu0 %v1153
    %1705 = vmatprep.subr.mxu0 %v1152
    %1706 = vmatpush1.msra.mxu0 %v1151
    %1707 = vmatprep.subr.mxu0 0.0
    %1708 = vmatpush2.msra.mxu0 0.0
    %1709 = vmatprep.subr.mxu0 0.0
    %1710 = vmatpush2.msra.mxu0 0.0
    %1711 = vmatprep.subr.mxu0 0.0
    %1712 = vmatpush2.msra.mxu0 0.0
    %1713 = vmatprep.subr.mxu0 0.0
    %1714 = vmatpush2.msra.mxu0 0.0
    %1715 = vmatprep.subr.mxu0 0.0
    %1716 = vmatpush2.msra.mxu0 0.0
    %1717 = vmatprep.subr.mxu0 0.0
    %1718 = vmatpush2.msra.mxu0 0.0
    %1719 = vmatprep.subr.mxu0 0.0
    %1720 = vmatpush2.msra.mxu0 0.0
    %1721 = vmatprep.subr.mxu0 0.0
    %1722 = vmatpush2.msra.mxu0 0.0
    %1723 = vmatprep.subr.mxu0 0.0
    %1724 = vmatpush2.msra.mxu0 0.0
    %1725 = vmatprep.subr.mxu0 0.0
    %1726 = vmatpush2.msra.mxu0 0.0
    %1727 = vmatprep.subr.mxu0 0.0
    %1728 = vmatpush2.msra.mxu0 0.0
    %1729 = vmatprep.subr.mxu0 0.0
    %1730 = vmatpush2.msra.mxu0 0.0
    %1731 = vmatprep.subr.mxu0 0.0
    %1732 = vmatpush2.msra.mxu0 0.0
    %1733 = vmatprep.subr.mxu0 0.0
    %1734 = vmatpush2.msra.mxu0 0.0
    %1735 = vmatprep.subr.mxu0 0.0
    %1736 = vmatpush2.msra.mxu0 0.0
    %1737 = vmatprep.subr.mxu0 0.0
    %1738 = vmatpush2.msra.mxu0 0.0
    %1739 = vmatprep.mubr.f32.mxu0 0.0
    %1740 = vmatmul.mubr.f32.gmra.mxu0 %v1673
    %v1741 = vpop.f32.mrf.mxu0
    %v1742 = vadd.f32 0.0, %v1741
    %v1743 = vpop.f32.mrf.mxu0
    %v1744 = vadd.f32 0.0, %v1743
    %1745 = vdwg.mxu0
    %v1748 = vrot.slane %v1742, 6
    %v1749 = vrot.slane %v1744, 6
    %v1752 = vadd.f32 %v1146, %v1748
    %v1753 = vadd.f32 %v1148, %v1749
    %v1754 = vmul.f32 %v1752, 0.5
    %v1755 = vmul.f32 %v1753, 0.5
    %v1756 = vtanh.pop %v1754
    %v1757 = vtanh.pop %v1755
    %v1758 = vmul.f32 %v1756, 0.5
    %v1759 = vadd.f32 %v1758, 0.5
    %v1760 = vmul.f32 %v1757, 0.5
    %v1761 = vadd.f32 %v1760, 0.5
    %v1763 = vrot.slane %v1667, 6
    %v1765 = vmul.f32 %v1759, %v1763
    %v1766 = vmul.f32 %v1759, %v1757
    %1768 = vrot.lane.b32.xlu0 %v1766, 64
    %v1769 = vpop.permute.xlu0 %1768
    %v1771 = vadd.f32 %v1765, %v1769
    %v1772 = vtanh.pop %v1771
    %v1773 = vmul.f32 %v1761, %v1772
    %v1775 = vrot.slane %v1773, 2
    %1776 = vrot.lane.b32.xlu0 %v1775, 64
    %v1777 = vpop.permute.xlu0 %1776
    %v1778 = vsel %vm82, %v1777, 0
    %1780 = vmatprep.subr.mxu0 0.0
    %1781 = vmatpush1.msra.mxu0 0.0
    %1782 = vmatprep.subr.mxu0 0.0
    %1783 = vmatpush1.msra.mxu0 0.0
    %1784 = vmatprep.subr.mxu0 0.0
    %1785 = vmatpush1.msra.mxu0 0.0
    %1786 = vmatprep.subr.mxu0 0.0
    %1787 = vmatpush1.msra.mxu0 0.0
    %1788 = vmatprep.subr.mxu0 0.0
    %1789 = vmatpush1.msra.mxu0 0.0
    %1790 = vmatprep.subr.mxu0 0.0
    %1791 = vmatpush1.msra.mxu0 0.0
    %1792 = vmatprep.subr.mxu0 0.0
    %1793 = vmatpush1.msra.mxu0 0.0
    %1794 = vmatprep.subr.mxu0 0.0
    %1795 = vmatpush1.msra.mxu0 0.0
    %1796 = vmatprep.subr.mxu0 %v1166
    %1797 = vmatpush1.msra.mxu0 %v1165
    %1798 = vmatprep.subr.mxu0 %v1164
    %1799 = vmatpush1.msra.mxu0 %v1163
    %1800 = vmatprep.subr.mxu0 %v1162
    %1801 = vmatpush1.msra.mxu0 %v1161
    %1802 = vmatprep.subr.mxu0 %v1160
    %1803 = vmatpush1.msra.mxu0 %v1159
    %1804 = vmatprep.subr.mxu0 %v1158
    %1805 = vmatpush1.msra.mxu0 %v1157
    %1806 = vmatprep.subr.mxu0 %v1156
    %1807 = vmatpush1.msra.mxu0 %v1155
    %1808 = vmatprep.subr.mxu0 %v1154
    %1809 = vmatpush1.msra.mxu0 %v1153
    %1810 = vmatprep.subr.mxu0 %v1152
    %1811 = vmatpush1.msra.mxu0 %v1151
    %1812 = vmatprep.subr.mxu0 0.0
    %1813 = vmatpush2.msra.mxu0 0.0
    %1814 = vmatprep.subr.mxu0 0.0
    %1815 = vmatpush2.msra.mxu0 0.0
    %1816 = vmatprep.subr.mxu0 0.0
    %1817 = vmatpush2.msra.mxu0 0.0
    %1818 = vmatprep.subr.mxu0 0.0
    %1819 = vmatpush2.msra.mxu0 0.0
    %1820 = vmatprep.subr.mxu0 0.0
    %1821 = vmatpush2.msra.mxu0 0.0
    %1822 = vmatprep.subr.mxu0 0.0
    %1823 = vmatpush2.msra.mxu0 0.0
    %1824 = vmatprep.subr.mxu0 0.0
    %1825 = vmatpush2.msra.mxu0 0.0
    %1826 = vmatprep.subr.mxu0 0.0
    %1827 = vmatpush2.msra.mxu0 0.0
    %1828 = vmatprep.subr.mxu0 0.0
    %1829 = vmatpush2.msra.mxu0 0.0
    %1830 = vmatprep.subr.mxu0 0.0
    %1831 = vmatpush2.msra.mxu0 0.0
    %1832 = vmatprep.subr.mxu0 0.0
    %1833 = vmatpush2.msra.mxu0 0.0
    %1834 = vmatprep.subr.mxu0 0.0
    %1835 = vmatpush2.msra.mxu0 0.0
    %1836 = vmatprep.subr.mxu0 0.0
    %1837 = vmatpush2.msra.mxu0 0.0
    %1838 = vmatprep.subr.mxu0 0.0
    %1839 = vmatpush2.msra.mxu0 0.0
    %1840 = vmatprep.subr.mxu0 0.0
    %1841 = vmatpush2.msra.mxu0 0.0
    %1842 = vmatprep.subr.mxu0 0.0
    %1843 = vmatpush2.msra.mxu0 0.0
    %1844 = vmatprep.mubr.f32.mxu0 0.0
    %1845 = vmatmul.mubr.f32.gmra.mxu0 %v1778
    %v1846 = vpop.f32.mrf.mxu0
    %v1847 = vadd.f32 0.0, %v1846
    %v1848 = vpop.f32.mrf.mxu0
    %v1849 = vadd.f32 0.0, %v1848
    %1850 = vdwg.mxu0
    %v1853 = vrot.slane %v1847, 4
    %v1854 = vrot.slane %v1849, 4
    %v1857 = vadd.f32 %v1146, %v1853
    %v1858 = vadd.f32 %v1148, %v1854
    %v1859 = vmul.f32 %v1857, 0.5
    %v1860 = vmul.f32 %v1858, 0.5
    %v1861 = vtanh.pop %v1859
    %v1862 = vtanh.pop %v1860
    %v1863 = vmul.f32 %v1861, 0.5
    %v1864 = vadd.f32 %v1863, 0.5
    %v1865 = vmul.f32 %v1862, 0.5
    %v1866 = vadd.f32 %v1865, 0.5
    %v1868 = vrot.slane %v1771, 6
    %v1870 = vmul.f32 %v1864, %v1868
    %v1871 = vmul.f32 %v1864, %v1862
    %1873 = vrot.lane.b32.xlu0 %v1871, 64
    %v1874 = vpop.permute.xlu0 %1873
    %v1876 = vadd.f32 %v1870, %v1874
    %v1877 = vtanh.pop %v1876
    %v1878 = vmul.f32 %v1866, %v1877
    %v1880 = vrot.slane %v1878, 4
    %1881 = vrot.lane.b32.xlu0 %v1880, 64
    %v1882 = vpop.permute.xlu0 %1881
    %v1883 = vsel %vm82, %v1882, 0
    %1885 = vmatprep.subr.mxu0 0.0
    %1886 = vmatpush1.msra.mxu0 0.0
    %1887 = vmatprep.subr.mxu0 0.0
    %1888 = vmatpush1.msra.mxu0 0.0
    %1889 = vmatprep.subr.mxu0 0.0
    %1890 = vmatpush1.msra.mxu0 0.0
    %1891 = vmatprep.subr.mxu0 0.0
    %1892 = vmatpush1.msra.mxu0 0.0
    %1893 = vmatprep.subr.mxu0 0.0
    %1894 = vmatpush1.msra.mxu0 0.0
    %1895 = vmatprep.subr.mxu0 0.0
    %1896 = vmatpush1.msra.mxu0 0.0
    %1897 = vmatprep.subr.mxu0 0.0
    %1898 = vmatpush1.msra.mxu0 0.0
    %1899 = vmatprep.subr.mxu0 0.0
    %1900 = vmatpush1.msra.mxu0 0.0
    %1901 = vmatprep.subr.mxu0 %v1166
    %1902 = vmatpush1.msra.mxu0 %v1165
    %1903 = vmatprep.subr.mxu0 %v1164
    %1904 = vmatpush1.msra.mxu0 %v1163
    %1905 = vmatprep.subr.mxu0 %v1162
    %1906 = vmatpush1.msra.mxu0 %v1161
    %1907 = vmatprep.subr.mxu0 %v1160
    %1908 = vmatpush1.msra.mxu0 %v1159
    %1909 = vmatprep.subr.mxu0 %v1158
    %1910 = vmatpush1.msra.mxu0 %v1157
    %1911 = vmatprep.subr.mxu0 %v1156
    %1912 = vmatpush1.msra.mxu0 %v1155
    %1913 = vmatprep.subr.mxu0 %v1154
    %1914 = vmatpush1.msra.mxu0 %v1153
    %1915 = vmatprep.subr.mxu0 %v1152
    %1916 = vmatpush1.msra.mxu0 %v1151
    %1917 = vmatprep.subr.mxu0 0.0
    %1918 = vmatpush2.msra.mxu0 0.0
    %1919 = vmatprep.subr.mxu0 0.0
    %1920 = vmatpush2.msra.mxu0 0.0
    %1921 = vmatprep.subr.mxu0 0.0
    %1922 = vmatpush2.msra.mxu0 0.0
    %1923 = vmatprep.subr.mxu0 0.0
    %1924 = vmatpush2.msra.mxu0 0.0
    %1925 = vmatprep.subr.mxu0 0.0
    %1926 = vmatpush2.msra.mxu0 0.0
    %1927 = vmatprep.subr.mxu0 0.0
    %1928 = vmatpush2.msra.mxu0 0.0
    %1929 = vmatprep.subr.mxu0 0.0
    %1930 = vmatpush2.msra.mxu0 0.0
    %1931 = vmatprep.subr.mxu0 0.0
    %1932 = vmatpush2.msra.mxu0 0.0
    %1933 = vmatprep.subr.mxu0 0.0
    %1934 = vmatpush2.msra.mxu0 0.0
    %1935 = vmatprep.subr.mxu0 0.0
    %1936 = vmatpush2.msra.mxu0 0.0
    %1937 = vmatprep.subr.mxu0 0.0
    %1938 = vmatpush2.msra.mxu0 0.0
    %1939 = vmatprep.subr.mxu0 0.0
    %1940 = vmatpush2.msra.mxu0 0.0
    %1941 = vmatprep.subr.mxu0 0.0
    %1942 = vmatpush2.msra.mxu0 0.0
    %1943 = vmatprep.subr.mxu0 0.0
    %1944 = vmatpush2.msra.mxu0 0.0
    %1945 = vmatprep.subr.mxu0 0.0
    %1946 = vmatpush2.msra.mxu0 0.0
    %1947 = vmatprep.subr.mxu0 0.0
    %1948 = vmatpush2.msra.mxu0 0.0
    %1949 = vmatprep.mubr.f32.mxu0 0.0
    %1950 = vmatmul.mubr.f32.gmra.mxu0 %v1883
    %v1951 = vpop.f32.mrf.mxu0
    %v1952 = vadd.f32 0.0, %v1951
    %v1953 = vpop.f32.mrf.mxu0
    %v1954 = vadd.f32 0.0, %v1953
    %1955 = vdwg.mxu0
    %v1958 = vrot.slane %v1952, 2
    %v1959 = vrot.slane %v1954, 2
    %v1962 = vadd.f32 %v1146, %v1958
    %v1963 = vadd.f32 %v1148, %v1959
    %v1964 = vmul.f32 %v1962, 0.5
    %v1965 = vmul.f32 %v1963, 0.5
    %v1966 = vtanh.pop %v1964
    %v1967 = vtanh.pop %v1965
    %v1968 = vmul.f32 %v1966, 0.5
    %v1969 = vadd.f32 %v1968, 0.5
    %v1970 = vmul.f32 %v1967, 0.5
    %v1971 = vadd.f32 %v1970, 0.5
    %v1973 = vrot.slane %v1876, 6
    %v1975 = vmul.f32 %v1969, %v1973
    %v1976 = vmul.f32 %v1969, %v1967
    %1978 = vrot.lane.b32.xlu0 %v1976, 64
    %v1979 = vpop.permute.xlu0 %1978
    %v1981 = vadd.f32 %v1975, %v1979
    %v1982 = vtanh.pop %v1981
    %v1983 = vmul.f32 %v1971, %v1982
    %v1984 = vld [vmem:[%s4] sm:$0xff]
    %v1985 = vld [vmem:[%s4 + $0x8] sm:$0xff]
    %v1986 = vld [vmem:[%s4 + $0x10] sm:$0xff]
    %v1987 = vld [vmem:[%s4 + $0x18] sm:$0xff]
    %v1988 = vld [vmem:[%s4 + $0x20] sm:$0xff]
    %v1989 = vld [vmem:[%s4 + $0x28] sm:$0xff]
    %v1990 = vld [vmem:[%s4 + $0x30] sm:$0xff]
    %v1991 = vld [vmem:[%s4 + $0x38] sm:$0xff]
    %v1992 = vld [vmem:[%s5] sm:$0x1]
    %v1994 = vlaneseq
    %v1995 = vshrl.u32 %v1994, 7
    %v1996 = vsub.s32 0, %v1995
    %v1997 = vrot.slane %v1992, %v1996
    %v2000 = vrot.slane %v1983, 6
    %2001 = vrot.lane.b32.xlu0 %v2000, 64
    %v2002 = vpop.permute.xlu0 %2001
    %v2003 = vsel %vm82, %v2002, 0
    %2005 = vmatprep.subr.mxu0 0.0
    %2006 = vmatpush1.msra.mxu0 0.0
    %2007 = vmatprep.subr.mxu0 0.0
    %2008 = vmatpush1.msra.mxu0 0.0
    %2009 = vmatprep.subr.mxu0 0.0
    %2010 = vmatpush1.msra.mxu0 0.0
    %2011 = vmatprep.subr.mxu0 0.0
    %2012 = vmatpush1.msra.mxu0 0.0
    %2013 = vmatprep.subr.mxu0 0.0
    %2014 = vmatpush1.msra.mxu0 0.0
    %2015 = vmatprep.subr.mxu0 0.0
    %2016 = vmatpush1.msra.mxu0 0.0
    %2017 = vmatprep.subr.mxu0 0.0
    %2018 = vmatpush1.msra.mxu0 0.0
    %2019 = vmatprep.subr.mxu0 0.0
    %2020 = vmatpush1.msra.mxu0 0.0
    %2021 = vmatprep.subr.mxu0 0.0
    %2022 = vmatpush1.msra.mxu0 %v1991
    %2023 = vmatprep.subr.mxu0 0.0
    %2024 = vmatpush1.msra.mxu0 %v1990
    %2025 = vmatprep.subr.mxu0 0.0
    %2026 = vmatpush1.msra.mxu0 %v1989
    %2027 = vmatprep.subr.mxu0 0.0
    %2028 = vmatpush1.msra.mxu0 %v1988
    %2029 = vmatprep.subr.mxu0 0.0
    %2030 = vmatpush1.msra.mxu0 %v1987
    %2031 = vmatprep.subr.mxu0 0.0
    %2032 = vmatpush1.msra.mxu0 %v1986
    %2033 = vmatprep.subr.mxu0 0.0
    %2034 = vmatpush1.msra.mxu0 %v1985
    %2035 = vmatprep.subr.mxu0 0.0
    %2036 = vmatpush1.msra.mxu0 %v1984
    %2037 = vmatprep.subr.mxu0 0.0
    %2038 = vmatpush2.msra.mxu0 0.0
    %2039 = vmatprep.subr.mxu0 0.0
    %2040 = vmatpush2.msra.mxu0 0.0
    %2041 = vmatprep.subr.mxu0 0.0
    %2042 = vmatpush2.msra.mxu0 0.0
    %2043 = vmatprep.subr.mxu0 0.0
    %2044 = vmatpush2.msra.mxu0 0.0
    %2045 = vmatprep.subr.mxu0 0.0
    %2046 = vmatpush2.msra.mxu0 0.0
    %2047 = vmatprep.subr.mxu0 0.0
    %2048 = vmatpush2.msra.mxu0 0.0
    %2049 = vmatprep.subr.mxu0 0.0
    %2050 = vmatpush2.msra.mxu0 0.0
    %2051 = vmatprep.subr.mxu0 0.0
    %2052 = vmatpush2.msra.mxu0 0.0
    %2053 = vmatprep.subr.mxu0 0.0
    %2054 = vmatpush2.msra.mxu0 0.0
    %2055 = vmatprep.subr.mxu0 0.0
    %2056 = vmatpush2.msra.mxu0 0.0
    %2057 = vmatprep.subr.mxu0 0.0
    %2058 = vmatpush2.msra.mxu0 0.0
    %2059 = vmatprep.subr.mxu0 0.0
    %2060 = vmatpush2.msra.mxu0 0.0
    %2061 = vmatprep.subr.mxu0 0.0
    %2062 = vmatpush2.msra.mxu0 0.0
    %2063 = vmatprep.subr.mxu0 0.0
    %2064 = vmatpush2.msra.mxu0 0.0
    %2065 = vmatprep.subr.mxu0 0.0
    %2066 = vmatpush2.msra.mxu0 0.0
    %2067 = vmatprep.subr.mxu0 0.0
    %2068 = vmatpush2.msra.mxu0 0.0
    %2069 = vmatprep.mubr.f32.mxu0 0.0
    %2070 = vmatmul.mubr.f32.gmra.mxu0 %v2003
    %v2071 = vpop.f32.mrf.mxu0
    %v2072 = vadd.f32 %v1997, %v2071
    %v2073 = vpop.f32.mrf.mxu0
    %2074 = vdwg.mxu0
    %vm2075 = vcmask 222208
    %v2076 = vsel %vm2075, %v2072, -inf
    %2077 = vmax.xlane.f32.xlu0 %v2076
    %v2078 = vpop.xlane.xlu0 %2077
    %v2079 = vsub.f32 %v2072, %v2078
    %v2080 = vmul.f32 %v2079, 1.442695
    %v2081 = vpow.pop %v2080
    %v2082 = vsel %vm2075, %v2081, 0.0
    %2083 = vadd.xlane.f32.xlu0 %v2082
    %v2084 = vpop.xlane.xlu0 %2083
    %v2085 = vrcp.pop %v2084
    %v2086 = vmul.f32 %v2081, %v2085
    %2087 = vst.msk [vmem:[#allocation8] sm:$0x3] %vm2075, %v2086
    // Predicated region
    $region34: #{deeplog_forward.1} parent=1 // pred_check
      _
    $region35: #{deeplog_forward.1} parent=1 // pred_check_branch
      %2089 = sbr.rel (0) target = $region37
    $region36: #{deeplog_forward.1} parent=1 // pred_region
      %s2091 = ssub.s32 32, 32
      %2092 = vsyncadd [#allocation5], %s2091
      %s2094 = sshll.u32 [#allocation8], 4
      %s2095 = int_to_ptr.vmem [resolvable:$true] %s2094
      %2097 = dma.vmem_to_hbm [thread:$0]  %s2095, 32, %s6, [#allocation5]
    $region37: #{deeplog_forward.1} parent=1 // pred_fallthru
      _
    // Predicated region
    $region38: #{deeplog_forward.1} parent=1 // pred_check
      _
    $region39: #{deeplog_forward.1} parent=1 // pred_check_branch
      %2099 = sbr.rel (0) target = $region41
    $region40: #{deeplog_forward.1} parent=1 // pred_region
      %2100 = dma.done [#allocation5], 32
    $region41: #{deeplog_forward.1} parent=1 // pred_fallthru
      _
    %2101 = vsyncpa [#allocation4], 1
    %2102 = vsyncpa [#allocation7], 1
    %2103 = vsyncpa [#allocation5], 1

</llo_original>
